<compile_context>
chip_gen: v7x
topology: tpu7x:2x2x1
jax: 0.10.0
libtpu: 0.0.40
codegen_flags: <defaults>
</compile_context>

<pallas_src>
import jax
import jax.numpy as jnp
from jax.experimental import pallas as pl
from jax.experimental.pallas import tpu as pltpu


def _round_up(x, m):
    return (x + m - 1) // m * m


# ----------------------------------------------------------------------------
# Kernel (one batch tile of bb rows, batch laid out along lanes):
#   u_feat = user_table^T @ onehot(u)          (2D, bb)   [GMF | MLP] features
#   i_feat = item_table^T @ onehot(i)          (2D, bb)
#   gmf    = u_feat[:D] * i_feat[:D]           (D,  bb)
#   h      = relu(W0u u_feat[D:] + W0i i_feat[D:] + b0)    (L0, bb)
#   h      = relu(W1 h + b1)                                (L1, bb)
#   logit  = wfin_g @ gmf + wout_f @ h + bfin_f             (1,  bb)
#   out    = sigmoid(logit)                                 (1,  bb)  lane-dense
# ----------------------------------------------------------------------------
def neumf_kernel(u_idx_ref, i_idx_ref,
                 user_tab_ref, item_tab_ref,
                 w0u_ref, w0i_ref, b0_ref, w1_ref, b1_ref,
                 wfin_g_ref, wout_f_ref, bfin_ref,
                 out_ref):
    f32, bf16 = jnp.float32, jnp.bfloat16
    bb = u_idx_ref.shape[1]
    two_d, n_users = user_tab_ref.shape
    n_items = item_tab_ref.shape[1]
    d = two_d // 2

    u_idx = u_idx_ref[...]                                    # (1, bb) int32
    i_idx = i_idx_ref[...]                                    # (1, bb) int32

    # Fused embedding gather: exact one-hot^T (vocab, bb) against the
    # VMEM-resident merged (2D, vocab) tables on the MXU (bf16 in, f32 acc).
    u_oh = (jax.lax.broadcasted_iota(jnp.int32, (n_users, bb), 0)
            == u_idx).astype(bf16)                            # (n_users, bb)
    i_oh = (jax.lax.broadcasted_iota(jnp.int32, (n_items, bb), 0)
            == i_idx).astype(bf16)                            # (n_items, bb)
    u_feat = jnp.dot(user_tab_ref[...], u_oh, preferred_element_type=f32)  # (2D, bb)
    i_feat = jnp.dot(item_tab_ref[...], i_oh, preferred_element_type=f32)  # (2D, bb)

    # GMF branch (f32 VPU math).
    gmf = u_feat[:d, :] * i_feat[:d, :]                       # (D, bb)

    # MLP tower, batch along lanes. Layer 0 consumes the two MLP halves of the
    # gathered features directly (W0 split per side -> no in-kernel concat).
    h = (jnp.dot(w0u_ref[...], u_feat[d:, :].astype(bf16), preferred_element_type=f32)
         + jnp.dot(w0i_ref[...], i_feat[d:, :].astype(bf16), preferred_element_type=f32)
         + b0_ref[...])
    h = jnp.maximum(h, 0.0)                                   # (L0, bb)
    h = jnp.maximum(
        jnp.dot(w1_ref[...], h.astype(bf16), preferred_element_type=f32) + b1_ref[...],
        0.0)                                                  # (L1, bb)

    # Final Linear(2D -> 1) head with MLP_output folded in.
    logit = (jnp.dot(wfin_g_ref[...], gmf, preferred_element_type=f32)
             + jnp.dot(wout_f_ref[...], h, preferred_element_type=f32)
             + bfin_ref[...])                                 # (1, bb), lane-dense
    out_ref[...] = jax.nn.sigmoid(logit)


def _prepare_params(params):
    """One-time layout/dtype prep + algebraic folds (feature-major, bf16)."""
    f32, bf16 = jnp.float32, jnp.bfloat16
    d = params["gmf_emb_user"].shape[1]
    # Merged per-side tables [GMF | MLP], transposed to (2D, rows), bf16.
    user_tab_t = jnp.concatenate(
        [params["gmf_emb_user"], params["mlp_emb_user"]], axis=1).T.astype(bf16)
    item_tab_t = jnp.concatenate(
        [params["gmf_emb_item"], params["mlp_emb_item"]], axis=1).T.astype(bf16)
    # MLP tower weights, transposed to (out, in); layer 0 split per side.
    w0u_t = params["w0"][:d, :].T.astype(bf16)            # (L0, D)
    w0i_t = params["w0"][d:, :].T.astype(bf16)            # (L0, D)
    b0_c = params["b0"].reshape(-1, 1).astype(f32)        # (L0, 1)
    w1_t = params["w1"].T.astype(bf16)                    # (L1, L0)
    b1_c = params["b1"].reshape(-1, 1).astype(f32)        # (L1, 1)
    # Final Linear(2D -> 1) with MLP_output folded in (one-time algebraic fold).
    wfin_g = params["wfin"][:d, :].T.astype(f32)                      # (1, D)
    wfin_m = params["wfin"][d:, :]                                    # (D, 1)
    wout_f = (params["wout"] @ wfin_m).T.astype(f32)                  # (1, L1)
    bfin_f = (params["bfin"] + params["bout"] @ wfin_m).astype(f32)   # (1, 1)
    return (user_tab_t, item_tab_t, w0u_t, w0i_t, b0_c, w1_t, b1_c,
            wfin_g, wout_f, bfin_f)


def _forward_pallas(prepared, u_idx, i_idx, bb, n_blocks, *, single_buffer_residents):
    (user_tab_t, item_tab_t, w0u_t, _w0i_t, _b0_c, w1_t, _b1_c,
     _wfin_g, _wout_f, _bfin_f) = prepared
    resident_arrays = prepared
    b_pad = n_blocks * bb

    # Lane-dense per-step tiles: (1, bb) index rows in, (1, bb) sigmoid row out.
    batch_spec = pl.BlockSpec((1, bb), lambda i: (0, i))

    def resident(arr):
        if single_buffer_residents:
            # Constant-index blocks need only one VMEM buffer (halves the
            # resident footprint vs the default double-buffered pipeline).
            return pl.BlockSpec(arr.shape, lambda i: (0, 0),
                                pipeline_mode=pl.Buffered(buffer_count=1))
        return pl.BlockSpec(arr.shape, lambda i: (0, 0))

    in_specs = [batch_spec, batch_spec] + [resident(a) for a in resident_arrays]

    two_d, n_users = user_tab_t.shape
    n_items = item_tab_t.shape[1]
    d = two_d // 2
    l0, l1 = w0u_t.shape[0], w1_t.shape[0]

    # VMEM budget from the actual shapes: resident weights/tables, the
    # double-buffered per-step index/output tiles, in-kernel one-hot and
    # activation intermediates, plus headroom.  Clamped to stay inside v7x's
    # 64 MiB per-core VMEM (the grid axis is "parallel", so residents are
    # replicated into each TensorCore's VMEM).
    resident_base = sum(int(a.size) * a.dtype.itemsize for a in resident_arrays)
    resident_vmem = resident_base * (1 if single_buffer_residents else 2)
    step_bytes = 2 * (2 * bb * 4 + bb * 4)                        # idx in + out, x2 bufs
    scratch_bytes = ((n_users + n_items) * bb * 6                 # iota + bf16 one-hot
                     + bb * (4 * two_d + l0 + l1 + d) * 4)        # activations
    vmem_limit = int(min(max(resident_vmem + step_bytes + scratch_bytes + (8 << 20),
                             32 << 20), 64 << 20))

    flops = 2 * b_pad * (two_d * (n_users + n_items)   # one-hot gathers
                         + two_d * l0 + l0 * l1        # MLP tower
                         + d + l1 + d)                 # head dots + GMF mul
    cost = pl.CostEstimate(flops=int(flops), transcendentals=int(b_pad),
                           bytes_accessed=int(resident_base + b_pad * (2 * 4 + 4)))

    return pl.pallas_call(
        neumf_kernel,
        out_shape=jax.ShapeDtypeStruct((1, b_pad), jnp.float32),
        grid_spec=pltpu.PrefetchScalarGridSpec(
            num_scalar_prefetch=0,
            grid=(n_blocks,),
            in_specs=in_specs,
            out_specs=batch_spec,
        ),
        compiler_params=pltpu.CompilerParams(
            dimension_semantics=("parallel",),
            vmem_limit_bytes=vmem_limit),
        cost_estimate=cost,
    )(u_idx, i_idx, *resident_arrays)


def fed_neumf_forward(params, user_indexes, item_indexes, *, block_b=512,
                      single_buffer_residents=None):
    """Fused FedNeuMF forward: embedding gathers + GMF + MLP tower + head +
    sigmoid in one pallas_call, gridded (batch-parallel) over lane-dense tiles.

    single_buffer_residents: True/False to force; None (default) tries
    single-buffered resident weights first and falls back to the default
    double-buffered pipeline if this Pallas build rejects pipeline_mode
    (the fallback only triggers when called eagerly, i.e. outside jit).
    """
    assert params["bfin"].shape[-1] == 1, \
        "optimized kernel implements the output_dim=1 head"  # TODO(synk): output_dim > 1

    prepared = _prepare_params(params)

    B = user_indexes.shape[0]
    # Lane-dim block: either a multiple of 128 or the full (padded) batch.
    bb = min(_round_up(block_b, 128), _round_up(B, 8))
    b_pad = _round_up(B, bb)
    n_blocks = b_pad // bb

    # Lane-dense (1, b_pad) index rows; padded rows use index 0 (a valid row)
    # and their outputs are sliced away below.
    u_idx = jnp.pad(user_indexes.astype(jnp.int32), (0, b_pad - B)).reshape(1, b_pad)
    i_idx = jnp.pad(item_indexes.astype(jnp.int32), (0, b_pad - B)).reshape(1, b_pad)

    if single_buffer_residents is None:
        try:
            out_row = _forward_pallas(prepared, u_idx, i_idx, bb, n_blocks,
                                      single_buffer_residents=True)
        except Exception:
            out_row = _forward_pallas(prepared, u_idx, i_idx, bb, n_blocks,
                                      single_buffer_residents=False)
    else:
        out_row = _forward_pallas(prepared, u_idx, i_idx, bb, n_blocks,
                                  single_buffer_residents=single_buffer_residents)

    return out_row[0, :B].reshape(B, 1)


def init_params(key, num_users, num_items, latent_dim, layers, output_dim):
    """Deterministic synthetic parameters (shapes match the PyTorch module).
    nn.Linear weights (out, in) are stored transposed as (in, out) for x @ W.
    The fused kernel implements the 2-layer MLP tower configuration."""
    ks = jax.random.split(key, 12)
    D = latent_dim
    L0, L1 = layers  # e.g. layers=[64, 32]

    def u(k, shape, scale=0.1):
        return jax.random.uniform(k, shape, jnp.float32, -1.0, 1.0) * scale

    return {
        "gmf_emb_user": u(ks[0], (num_users, D)),
        "gmf_emb_item": u(ks[1], (num_items, D)),
        "mlp_emb_user": u(ks[2], (num_users, D)),
        "mlp_emb_item": u(ks[3], (num_items, D)),
        "w0":   u(ks[4], (2 * D, L0)),
        "b0":   u(ks[5], (1, L0)),
        "w1":   u(ks[6], (L0, L1)),
        "b1":   u(ks[7], (1, L1)),
        "wout": u(ks[8], (L1, D)),
        "bout": u(ks[9], (1, D)),
        "wfin": u(ks[10], (2 * D, output_dim)),
        "bfin": u(ks[11], (1, output_dim)),
    }


def reference_forward(params, user_indexes, item_indexes):
    """Pure-JAX reference mirroring the PyTorch forward (full f32)."""
    gmf_u = params["gmf_emb_user"][user_indexes]
    gmf_i = params["gmf_emb_item"][item_indexes]
    gmf_vec = gmf_u * gmf_i
    mlp_u = params["mlp_emb_user"][user_indexes]
    mlp_i = params["mlp_emb_item"][item_indexes]
    x = jnp.concatenate([mlp_u, mlp_i], axis=-1)
    x = jax.nn.relu(x @ params["w0"] + params["b0"])
    x = jax.nn.relu(x @ params["w1"] + params["b1"])
    mlp_vec = x @ params["wout"] + params["bout"]
    vec = jnp.concatenate([gmf_vec, mlp_vec], axis=-1)
    return jax.nn.sigmoid(vec @ params["wfin"] + params["bfin"])


if __name__ == "__main__":
    num_users, num_items = 100, 200
    latent_dim = 32
    layers = [64, 32]
    output_dim = 1
    batch = 8

    key = jax.random.PRNGKey(0)
    kp, ku, ki = jax.random.split(key, 3)
    params = init_params(kp, num_users, num_items, latent_dim, layers, output_dim)

    user_indexes = jax.random.randint(ku, (batch,), 0, num_users, dtype=jnp.int32)
    item_indexes = jax.random.randint(ki, (batch,), 0, num_items, dtype=jnp.int32)

    # Called eagerly so the single-buffer-resident probe can fall back cleanly;
    # under an outer jit pass single_buffer_residents=True/False explicitly.
    out = jax.block_until_ready(fed_neumf_forward(params, user_indexes, item_indexes))

    ref = reference_forward(params, user_indexes, item_indexes)
    assert out.shape == (batch, output_dim)
    # Tolerance covers bf16 storage of tables / MLP weights and MXU-vs-XLA
    # accumulation-order differences; real bugs show up as O(1e-1) errors.
    assert jnp.allclose(out, ref, atol=5e-3, rtol=5e-3), "Pallas output mismatch vs reference"

    print("KERNEL_OK")
</pallas_src>

<mosaic_0001>
module attributes {stable_mosaic.version = 11 : i64} {
  func.func @neumf_kernel(%arg0: i32, %arg1: memref<1x8xi32, #tpu.memory_space<vmem>>, %arg2: memref<1x8xi32, #tpu.memory_space<vmem>>, %arg3: memref<64x100xbf16, #tpu.memory_space<vmem>>, %arg4: memref<64x200xbf16, #tpu.memory_space<vmem>>, %arg5: memref<64x32xbf16, #tpu.memory_space<vmem>>, %arg6: memref<64x32xbf16, #tpu.memory_space<vmem>>, %arg7: memref<64x1xf32, #tpu.memory_space<vmem>>, %arg8: memref<32x64xbf16, #tpu.memory_space<vmem>>, %arg9: memref<32x1xf32, #tpu.memory_space<vmem>>, %arg10: memref<1x32xf32, #tpu.memory_space<vmem>>, %arg11: memref<1x32xf32, #tpu.memory_space<vmem>>, %arg12: memref<1x1xf32, #tpu.memory_space<vmem>>, %arg13: memref<1x8xf32, #tpu.memory_space<vmem>>) attributes {dimension_semantics = [#tpu.dimension_semantics<parallel>], iteration_bounds = array<i64: 1>, scalar_prefetch = 0 : i64, scratch_operands = 0 : i64, tpu.core_type = #tpu.core_type<tc>, window_params = [{transform_indices = @transform_0, window_bounds = array<i64: 1, 8>}, {transform_indices = @transform_1, window_bounds = array<i64: 1, 8>}, {pipeline_mode = #tpu.pipeline_mode<synchronous>, transform_indices = @transform_2, window_bounds = array<i64: 64, 100>}, {pipeline_mode = #tpu.pipeline_mode<synchronous>, transform_indices = @transform_3, window_bounds = array<i64: 64, 200>}, {pipeline_mode = #tpu.pipeline_mode<synchronous>, transform_indices = @transform_4, window_bounds = array<i64: 64, 32>}, {pipeline_mode = #tpu.pipeline_mode<synchronous>, transform_indices = @transform_5, window_bounds = array<i64: 64, 32>}, {pipeline_mode = #tpu.pipeline_mode<synchronous>, transform_indices = @transform_6, window_bounds = array<i64: 64, 1>}, {pipeline_mode = #tpu.pipeline_mode<synchronous>, transform_indices = @transform_7, window_bounds = array<i64: 32, 64>}, {pipeline_mode = #tpu.pipeline_mode<synchronous>, transform_indices = @transform_8, window_bounds = array<i64: 32, 1>}, {pipeline_mode = #tpu.pipeline_mode<synchronous>, transform_indices = @transform_9, window_bounds = array<i64: 1, 32>}, {pipeline_mode = #tpu.pipeline_mode<synchronous>, transform_indices = @transform_10, window_bounds = array<i64: 1, 32>}, {pipeline_mode = #tpu.pipeline_mode<synchronous>, transform_indices = @transform_11, window_bounds = array<i64: 1, 1>}, {transform_indices = @transform_12, window_bounds = array<i64: 1, 8>}]} {
    %c0 = arith.constant 0 : index
    %c0_0 = arith.constant 0 : index
    %0 = vector.load %arg1[%c0, %c0_0] : memref<1x8xi32, #tpu.memory_space<vmem>>, vector<1x8xi32>
    %c0_1 = arith.constant 0 : index
    %c0_2 = arith.constant 0 : index
    %1 = vector.load %arg2[%c0_1, %c0_2] : memref<1x8xi32, #tpu.memory_space<vmem>>, vector<1x8xi32>
    %2 = tpu.iota {dimensions = array<i32: 0>} : vector<100x8xi32>
    %3 = vector.broadcast %0 : vector<1x8xi32> to vector<100x8xi32>
    %4 = arith.cmpi eq, %2, %3 : vector<100x8xi32>
    %5 = arith.extui %4 : vector<100x8xi1> to vector<100x8xi32>
    %6 = arith.sitofp %5 : vector<100x8xi32> to vector<100x8xf32>
    %7 = arith.truncf %6 : vector<100x8xf32> to vector<100x8xbf16>
    %8 = tpu.iota {dimensions = array<i32: 0>} : vector<200x8xi32>
    %9 = vector.broadcast %1 : vector<1x8xi32> to vector<200x8xi32>
    %10 = arith.cmpi eq, %8, %9 : vector<200x8xi32>
    %11 = arith.extui %10 : vector<200x8xi1> to vector<200x8xi32>
    %12 = arith.sitofp %11 : vector<200x8xi32> to vector<200x8xf32>
    %13 = arith.truncf %12 : vector<200x8xf32> to vector<200x8xbf16>
    %c0_3 = arith.constant 0 : index
    %c0_4 = arith.constant 0 : index
    %14 = vector.load %arg3[%c0_3, %c0_4] : memref<64x100xbf16, #tpu.memory_space<vmem>>, vector<64x100xbf16>
    %cst = arith.constant dense<0.000000e+00> : vector<64x8xf32>
    %15 = tpu.matmul %14, %7, %cst {dimension_numbers = #tpu.dot_dimension_numbers<[1], [0], [0], [1], [0, 0, 1, 1], [], []>} : vector<64x100xbf16>, vector<100x8xbf16>, vector<64x8xf32> -> vector<64x8xf32>
    %c0_5 = arith.constant 0 : index
    %c0_6 = arith.constant 0 : index
    %16 = vector.load %arg4[%c0_5, %c0_6] : memref<64x200xbf16, #tpu.memory_space<vmem>>, vector<64x200xbf16>
    %cst_7 = arith.constant dense<0.000000e+00> : vector<64x8xf32>
    %17 = tpu.matmul %16, %13, %cst_7 {dimension_numbers = #tpu.dot_dimension_numbers<[1], [0], [0], [1], [0, 0, 1, 1], [], []>} : vector<64x200xbf16>, vector<200x8xbf16>, vector<64x8xf32> -> vector<64x8xf32>
    %18 = vector.extract_strided_slice %15 {offsets = [0, 0], sizes = [32, 8], strides = [1, 1]} : vector<64x8xf32> to vector<32x8xf32>
    %19 = vector.extract_strided_slice %17 {offsets = [0, 0], sizes = [32, 8], strides = [1, 1]} : vector<64x8xf32> to vector<32x8xf32>
    %20 = arith.mulf %18, %19 : vector<32x8xf32>
    %c0_8 = arith.constant 0 : index
    %c0_9 = arith.constant 0 : index
    %21 = vector.load %arg5[%c0_8, %c0_9] : memref<64x32xbf16, #tpu.memory_space<vmem>>, vector<64x32xbf16>
    %22 = vector.extract_strided_slice %15 {offsets = [32, 0], sizes = [32, 8], strides = [1, 1]} : vector<64x8xf32> to vector<32x8xf32>
    %23 = arith.truncf %22 : vector<32x8xf32> to vector<32x8xbf16>
    %cst_10 = arith.constant dense<0.000000e+00> : vector<64x8xf32>
    %24 = tpu.matmul %21, %23, %cst_10 {dimension_numbers = #tpu.dot_dimension_numbers<[1], [0], [0], [1], [0, 0, 1, 1], [], []>} : vector<64x32xbf16>, vector<32x8xbf16>, vector<64x8xf32> -> vector<64x8xf32>
    %c0_11 = arith.constant 0 : index
    %c0_12 = arith.constant 0 : index
    %25 = vector.load %arg6[%c0_11, %c0_12] : memref<64x32xbf16, #tpu.memory_space<vmem>>, vector<64x32xbf16>
    %26 = vector.extract_strided_slice %17 {offsets = [32, 0], sizes = [32, 8], strides = [1, 1]} : vector<64x8xf32> to vector<32x8xf32>
    %27 = arith.truncf %26 : vector<32x8xf32> to vector<32x8xbf16>
    %cst_13 = arith.constant dense<0.000000e+00> : vector<64x8xf32>
    %28 = tpu.matmul %25, %27, %cst_13 {dimension_numbers = #tpu.dot_dimension_numbers<[1], [0], [0], [1], [0, 0, 1, 1], [], []>} : vector<64x32xbf16>, vector<32x8xbf16>, vector<64x8xf32> -> vector<64x8xf32>
    %29 = arith.addf %24, %28 : vector<64x8xf32>
    %c0_14 = arith.constant 0 : index
    %c0_15 = arith.constant 0 : index
    %30 = vector.load %arg7[%c0_14, %c0_15] : memref<64x1xf32, #tpu.memory_space<vmem>>, vector<64x1xf32>
    %31 = vector.broadcast %30 : vector<64x1xf32> to vector<64x8xf32>
    %32 = arith.addf %29, %31 : vector<64x8xf32>
    %cst_16 = arith.constant 0.000000e+00 : f32
    %33 = vector.broadcast %cst_16 : f32 to vector<64x8xf32>
    %34 = arith.maximumf %32, %33 : vector<64x8xf32>
    %c0_17 = arith.constant 0 : index
    %c0_18 = arith.constant 0 : index
    %35 = vector.load %arg8[%c0_17, %c0_18] : memref<32x64xbf16, #tpu.memory_space<vmem>>, vector<32x64xbf16>
    %36 = arith.truncf %34 : vector<64x8xf32> to vector<64x8xbf16>
    %cst_19 = arith.constant dense<0.000000e+00> : vector<32x8xf32>
    %37 = tpu.matmul %35, %36, %cst_19 {dimension_numbers = #tpu.dot_dimension_numbers<[1], [0], [0], [1], [0, 0, 1, 1], [], []>} : vector<32x64xbf16>, vector<64x8xbf16>, vector<32x8xf32> -> vector<32x8xf32>
    %c0_20 = arith.constant 0 : index
    %c0_21 = arith.constant 0 : index
    %38 = vector.load %arg9[%c0_20, %c0_21] : memref<32x1xf32, #tpu.memory_space<vmem>>, vector<32x1xf32>
    %39 = vector.broadcast %38 : vector<32x1xf32> to vector<32x8xf32>
    %40 = arith.addf %37, %39 : vector<32x8xf32>
    %cst_22 = arith.constant 0.000000e+00 : f32
    %41 = vector.broadcast %cst_22 : f32 to vector<32x8xf32>
    %42 = arith.maximumf %40, %41 : vector<32x8xf32>
    %c0_23 = arith.constant 0 : index
    %c0_24 = arith.constant 0 : index
    %43 = vector.load %arg10[%c0_23, %c0_24] : memref<1x32xf32, #tpu.memory_space<vmem>>, vector<1x32xf32>
    %cst_25 = arith.constant dense<0.000000e+00> : vector<1x8xf32>
    %44 = tpu.matmul %43, %20, %cst_25 {dimension_numbers = #tpu.dot_dimension_numbers<[1], [0], [0], [1], [0, 0, 1, 1], [], []>} : vector<1x32xf32>, vector<32x8xf32>, vector<1x8xf32> -> vector<1x8xf32>
    %c0_26 = arith.constant 0 : index
    %c0_27 = arith.constant 0 : index
    %45 = vector.load %arg11[%c0_26, %c0_27] : memref<1x32xf32, #tpu.memory_space<vmem>>, vector<1x32xf32>
    %cst_28 = arith.constant dense<0.000000e+00> : vector<1x8xf32>
    %46 = tpu.matmul %45, %42, %cst_28 {dimension_numbers = #tpu.dot_dimension_numbers<[1], [0], [0], [1], [0, 0, 1, 1], [], []>} : vector<1x32xf32>, vector<32x8xf32>, vector<1x8xf32> -> vector<1x8xf32>
    %47 = arith.addf %44, %46 : vector<1x8xf32>
    %c0_29 = arith.constant 0 : index
    %c0_30 = arith.constant 0 : index
    %48 = vector.load %arg12[%c0_29, %c0_30] : memref<1x1xf32, #tpu.memory_space<vmem>>, vector<1x1xf32>
    %49 = vector.broadcast %48 : vector<1x1xf32> to vector<1x8xf32>
    %50 = arith.addf %47, %49 : vector<1x8xf32>
    %51 = arith.negf %50 : vector<1x8xf32>
    %52 = math.exp %51 : vector<1x8xf32>
    %cst_31 = arith.constant 1.000000e+00 : f32
    %53 = vector.broadcast %cst_31 : f32 to vector<1x8xf32>
    %54 = arith.addf %53, %52 : vector<1x8xf32>
    %55 = arith.divf %53, %54 : vector<1x8xf32>
    %c0_32 = arith.constant 0 : index
    %c0_33 = arith.constant 0 : index
    %56 = vector.load %arg13[%c0_32, %c0_33] : memref<1x8xf32, #tpu.memory_space<vmem>>, vector<1x8xf32>
    tpu.vector_store %arg13[%c0_32, %c0_33], %55 {strides = array<i32>} : memref<1x8xf32, #tpu.memory_space<vmem>>, vector<1x8xf32>,
    return
  }
  func.func @transform_0(%arg0: i32) -> (i32, i32) {
    %c0_i32 = arith.constant 0 : i32
    %c0_i32_0 = arith.constant 0 : i32
    return %c0_i32, %arg0 : i32, i32
  }
  func.func @transform_1(%arg0: i32) -> (i32, i32) {
    %c0_i32 = arith.constant 0 : i32
    %c0_i32_0 = arith.constant 0 : i32
    return %c0_i32, %arg0 : i32, i32
  }
  func.func @transform_2(%arg0: i32) -> (i32, i32) {
    %c0_i32 = arith.constant 0 : i32
    %c0_i32_0 = arith.constant 0 : i32
    %c0_i32_1 = arith.constant 0 : i32
    return %c0_i32, %c0_i32_0 : i32, i32
  }
  func.func @transform_3(%arg0: i32) -> (i32, i32) {
    %c0_i32 = arith.constant 0 : i32
    %c0_i32_0 = arith.constant 0 : i32
    %c0_i32_1 = arith.constant 0 : i32
    return %c0_i32, %c0_i32_0 : i32, i32
  }
  func.func @transform_4(%arg0: i32) -> (i32, i32) {
    %c0_i32 = arith.constant 0 : i32
    %c0_i32_0 = arith.constant 0 : i32
    %c0_i32_1 = arith.constant 0 : i32
    return %c0_i32, %c0_i32_0 : i32, i32
  }
  func.func @transform_5(%arg0: i32) -> (i32, i32) {
    %c0_i32 = arith.constant 0 : i32
    %c0_i32_0 = arith.constant 0 : i32
    %c0_i32_1 = arith.constant 0 : i32
    return %c0_i32, %c0_i32_0 : i32, i32
  }
  func.func @transform_6(%arg0: i32) -> (i32, i32) {
    %c0_i32 = arith.constant 0 : i32
    %c0_i32_0 = arith.constant 0 : i32
    %c0_i32_1 = arith.constant 0 : i32
    return %c0_i32, %c0_i32_0 : i32, i32
  }
  func.func @transform_7(%arg0: i32) -> (i32, i32) {
    %c0_i32 = arith.constant 0 : i32
    %c0_i32_0 = arith.constant 0 : i32
    %c0_i32_1 = arith.constant 0 : i32
    return %c0_i32, %c0_i32_0 : i32, i32
  }
  func.func @transform_8(%arg0: i32) -> (i32, i32) {
    %c0_i32 = arith.constant 0 : i32
    %c0_i32_0 = arith.constant 0 : i32
    %c0_i32_1 = arith.constant 0 : i32
    return %c0_i32, %c0_i32_0 : i32, i32
  }
  func.func @transform_9(%arg0: i32) -> (i32, i32) {
    %c0_i32 = arith.constant 0 : i32
    %c0_i32_0 = arith.constant 0 : i32
    %c0_i32_1 = arith.constant 0 : i32
    return %c0_i32, %c0_i32_0 : i32, i32
  }
  func.func @transform_10(%arg0: i32) -> (i32, i32) {
    %c0_i32 = arith.constant 0 : i32
    %c0_i32_0 = arith.constant 0 : i32
    %c0_i32_1 = arith.constant 0 : i32
    return %c0_i32, %c0_i32_0 : i32, i32
  }
  func.func @transform_11(%arg0: i32) -> (i32, i32) {
    %c0_i32 = arith.constant 0 : i32
    %c0_i32_0 = arith.constant 0 : i32
    %c0_i32_1 = arith.constant 0 : i32
    return %c0_i32, %c0_i32_0 : i32, i32
  }
  func.func @transform_12(%arg0: i32) -> (i32, i32) {
    %c0_i32 = arith.constant 0 : i32
    %c0_i32_0 = arith.constant 0 : i32
    return %c0_i32, %arg0 : i32, i32
  }
}

module attributes {stable_mosaic.version = 11 : i64} {
  func.func @neumf_kernel(%arg0: i32, %arg1: memref<1x8xi32, #tpu.memory_space<vmem>>, %arg2: memref<1x8xi32, #tpu.memory_space<vmem>>, %arg3: memref<64x100xbf16, #tpu.memory_space<vmem>>, %arg4: memref<64x200xbf16, #tpu.memory_space<vmem>>, %arg5: memref<64x32xbf16, #tpu.memory_space<vmem>>, %arg6: memref<64x32xbf16, #tpu.memory_space<vmem>>, %arg7: memref<64x1xf32, #tpu.memory_space<vmem>>, %arg8: memref<32x64xbf16, #tpu.memory_space<vmem>>, %arg9: memref<32x1xf32, #tpu.memory_space<vmem>>, %arg10: memref<1x32xf32, #tpu.memory_space<vmem>>, %arg11: memref<1x32xf32, #tpu.memory_space<vmem>>, %arg12: memref<1x1xf32, #tpu.memory_space<vmem>>, %arg13: memref<1x8xf32, #tpu.memory_space<vmem>>) attributes {dimension_semantics = [#tpu.dimension_semantics<parallel>], iteration_bounds = array<i64: 1>, scalar_prefetch = 0 : i64, scratch_operands = 0 : i64, tpu.core_type = #tpu.core_type<tc>, window_params = [{transform_indices = @transform_0, window_bounds = array<i64: 1, 8>}, {transform_indices = @transform_1, window_bounds = array<i64: 1, 8>}, {pipeline_mode = #tpu.pipeline_mode<synchronous>, transform_indices = @transform_2, window_bounds = array<i64: 64, 100>}, {pipeline_mode = #tpu.pipeline_mode<synchronous>, transform_indices = @transform_3, window_bounds = array<i64: 64, 200>}, {pipeline_mode = #tpu.pipeline_mode<synchronous>, transform_indices = @transform_4, window_bounds = array<i64: 64, 32>}, {pipeline_mode = #tpu.pipeline_mode<synchronous>, transform_indices = @transform_5, window_bounds = array<i64: 64, 32>}, {pipeline_mode = #tpu.pipeline_mode<synchronous>, transform_indices = @transform_6, window_bounds = array<i64: 64, 1>}, {pipeline_mode = #tpu.pipeline_mode<synchronous>, transform_indices = @transform_7, window_bounds = array<i64: 32, 64>}, {pipeline_mode = #tpu.pipeline_mode<synchronous>, transform_indices = @transform_8, window_bounds = array<i64: 32, 1>}, {pipeline_mode = #tpu.pipeline_mode<synchronous>, transform_indices = @transform_9, window_bounds = array<i64: 1, 32>}, {pipeline_mode = #tpu.pipeline_mode<synchronous>, transform_indices = @transform_10, window_bounds = array<i64: 1, 32>}, {pipeline_mode = #tpu.pipeline_mode<synchronous>, transform_indices = @transform_11, window_bounds = array<i64: 1, 1>}, {transform_indices = @transform_12, window_bounds = array<i64: 1, 8>}]} {
    %c0 = arith.constant 0 : index
    %c0_0 = arith.constant 0 : index
    %0 = vector.load %arg1[%c0, %c0_0] : memref<1x8xi32, #tpu.memory_space<vmem>>, vector<1x8xi32>
    %c0_1 = arith.constant 0 : index
    %c0_2 = arith.constant 0 : index
    %1 = vector.load %arg2[%c0_1, %c0_2] : memref<1x8xi32, #tpu.memory_space<vmem>>, vector<1x8xi32>
    %2 = tpu.iota {dimensions = array<i32: 0>} : vector<100x8xi32>
    %3 = vector.broadcast %0 : vector<1x8xi32> to vector<100x8xi32>
    %4 = arith.cmpi eq, %2, %3 : vector<100x8xi32>
    %5 = arith.extui %4 : vector<100x8xi1> to vector<100x8xi32>
    %6 = arith.sitofp %5 : vector<100x8xi32> to vector<100x8xf32>
    %7 = arith.truncf %6 : vector<100x8xf32> to vector<100x8xbf16>
    %8 = tpu.iota {dimensions = array<i32: 0>} : vector<200x8xi32>
    %9 = vector.broadcast %1 : vector<1x8xi32> to vector<200x8xi32>
    %10 = arith.cmpi eq, %8, %9 : vector<200x8xi32>
    %11 = arith.extui %10 : vector<200x8xi1> to vector<200x8xi32>
    %12 = arith.sitofp %11 : vector<200x8xi32> to vector<200x8xf32>
    %13 = arith.truncf %12 : vector<200x8xf32> to vector<200x8xbf16>
    %c0_3 = arith.constant 0 : index
    %c0_4 = arith.constant 0 : index
    %14 = vector.load %arg3[%c0_3, %c0_4] : memref<64x100xbf16, #tpu.memory_space<vmem>>, vector<64x100xbf16>
    %cst = arith.constant dense<0.000000e+00> : vector<64x8xf32>
    %15 = tpu.matmul %14, %7, %cst {dimension_numbers = #tpu.dot_dimension_numbers<[1], [0], [0], [1], [0, 0, 1, 1], [], []>} : vector<64x100xbf16>, vector<100x8xbf16>, vector<64x8xf32> -> vector<64x8xf32>
    %c0_5 = arith.constant 0 : index
    %c0_6 = arith.constant 0 : index
    %16 = vector.load %arg4[%c0_5, %c0_6] : memref<64x200xbf16, #tpu.memory_space<vmem>>, vector<64x200xbf16>
    %cst_7 = arith.constant dense<0.000000e+00> : vector<64x8xf32>
    %17 = tpu.matmul %16, %13, %cst_7 {dimension_numbers = #tpu.dot_dimension_numbers<[1], [0], [0], [1], [0, 0, 1, 1], [], []>} : vector<64x200xbf16>, vector<200x8xbf16>, vector<64x8xf32> -> vector<64x8xf32>
    %18 = vector.extract_strided_slice %15 {offsets = [0, 0], sizes = [32, 8], strides = [1, 1]} : vector<64x8xf32> to vector<32x8xf32>
    %19 = vector.extract_strided_slice %17 {offsets = [0, 0], sizes = [32, 8], strides = [1, 1]} : vector<64x8xf32> to vector<32x8xf32>
    %20 = arith.mulf %18, %19 : vector<32x8xf32>
    %c0_8 = arith.constant 0 : index
    %c0_9 = arith.constant 0 : index
    %21 = vector.load %arg5[%c0_8, %c0_9] : memref<64x32xbf16, #tpu.memory_space<vmem>>, vector<64x32xbf16>
    %22 = vector.extract_strided_slice %15 {offsets = [32, 0], sizes = [32, 8], strides = [1, 1]} : vector<64x8xf32> to vector<32x8xf32>
    %23 = arith.truncf %22 : vector<32x8xf32> to vector<32x8xbf16>
    %cst_10 = arith.constant dense<0.000000e+00> : vector<64x8xf32>
    %24 = tpu.matmul %21, %23, %cst_10 {dimension_numbers = #tpu.dot_dimension_numbers<[1], [0], [0], [1], [0, 0, 1, 1], [], []>} : vector<64x32xbf16>, vector<32x8xbf16>, vector<64x8xf32> -> vector<64x8xf32>
    %c0_11 = arith.constant 0 : index
    %c0_12 = arith.constant 0 : index
    %25 = vector.load %arg6[%c0_11, %c0_12] : memref<64x32xbf16, #tpu.memory_space<vmem>>, vector<64x32xbf16>
    %26 = vector.extract_strided_slice %17 {offsets = [32, 0], sizes = [32, 8], strides = [1, 1]} : vector<64x8xf32> to vector<32x8xf32>
    %27 = arith.truncf %26 : vector<32x8xf32> to vector<32x8xbf16>
    %cst_13 = arith.constant dense<0.000000e+00> : vector<64x8xf32>
    %28 = tpu.matmul %25, %27, %cst_13 {dimension_numbers = #tpu.dot_dimension_numbers<[1], [0], [0], [1], [0, 0, 1, 1], [], []>} : vector<64x32xbf16>, vector<32x8xbf16>, vector<64x8xf32> -> vector<64x8xf32>
    %29 = arith.addf %24, %28 : vector<64x8xf32>
    %c0_14 = arith.constant 0 : index
    %c0_15 = arith.constant 0 : index
    %30 = vector.load %arg7[%c0_14, %c0_15] : memref<64x1xf32, #tpu.memory_space<vmem>>, vector<64x1xf32>
    %31 = vector.broadcast %30 : vector<64x1xf32> to vector<64x8xf32>
    %32 = arith.addf %29, %31 : vector<64x8xf32>
    %cst_16 = arith.constant 0.000000e+00 : f32
    %33 = vector.broadcast %cst_16 : f32 to vector<64x8xf32>
    %34 = arith.maximumf %32, %33 : vector<64x8xf32>
    %c0_17 = arith.constant 0 : index
    %c0_18 = arith.constant 0 : index
    %35 = vector.load %arg8[%c0_17, %c0_18] : memref<32x64xbf16, #tpu.memory_space<vmem>>, vector<32x64xbf16>
    %36 = arith.truncf %34 : vector<64x8xf32> to vector<64x8xbf16>
    %cst_19 = arith.constant dense<0.000000e+00> : vector<32x8xf32>
    %37 = tpu.matmul %35, %36, %cst_19 {dimension_numbers = #tpu.dot_dimension_numbers<[1], [0], [0], [1], [0, 0, 1, 1], [], []>} : vector<32x64xbf16>, vector<64x8xbf16>, vector<32x8xf32> -> vector<32x8xf32>
    %c0_20 = arith.constant 0 : index
    %c0_21 = arith.constant 0 : index
    %38 = vector.load %arg9[%c0_20, %c0_21] : memref<32x1xf32, #tpu.memory_space<vmem>>, vector<32x1xf32>
    %39 = vector.broadcast %38 : vector<32x1xf32> to vector<32x8xf32>
    %40 = arith.addf %37, %39 : vector<32x8xf32>
    %cst_22 = arith.constant 0.000000e+00 : f32
    %41 = vector.broadcast %cst_22 : f32 to vector<32x8xf32>
    %42 = arith.maximumf %40, %41 : vector<32x8xf32>
    %c0_23 = arith.constant 0 : index
    %c0_24 = arith.constant 0 : index
    %43 = vector.load %arg10[%c0_23, %c0_24] : memref<1x32xf32, #tpu.memory_space<vmem>>, vector<1x32xf32>
    %cst_25 = arith.constant dense<0.000000e+00> : vector<1x8xf32>
    %44 = tpu.matmul %43, %20, %cst_25 {dimension_numbers = #tpu.dot_dimension_numbers<[1], [0], [0], [1], [0, 0, 1, 1], [], []>} : vector<1x32xf32>, vector<32x8xf32>, vector<1x8xf32> -> vector<1x8xf32>
    %c0_26 = arith.constant 0 : index
    %c0_27 = arith.constant 0 : index
    %45 = vector.load %arg11[%c0_26, %c0_27] : memref<1x32xf32, #tpu.memory_space<vmem>>, vector<1x32xf32>
    %cst_28 = arith.constant dense<0.000000e+00> : vector<1x8xf32>
    %46 = tpu.matmul %45, %42, %cst_28 {dimension_numbers = #tpu.dot_dimension_numbers<[1], [0], [0], [1], [0, 0, 1, 1], [], []>} : vector<1x32xf32>, vector<32x8xf32>, vector<1x8xf32> -> vector<1x8xf32>
    %47 = arith.addf %44, %46 : vector<1x8xf32>
    %c0_29 = arith.constant 0 : index
    %c0_30 = arith.constant 0 : index
    %48 = vector.load %arg12[%c0_29, %c0_30] : memref<1x1xf32, #tpu.memory_space<vmem>>, vector<1x1xf32>
    %49 = vector.broadcast %48 : vector<1x1xf32> to vector<1x8xf32>
    %50 = arith.addf %47, %49 : vector<1x8xf32>
    %51 = arith.negf %50 : vector<1x8xf32>
    %52 = math.exp %51 : vector<1x8xf32>
    %cst_31 = arith.constant 1.000000e+00 : f32
    %53 = vector.broadcast %cst_31 : f32 to vector<1x8xf32>
    %54 = arith.addf %53, %52 : vector<1x8xf32>
    %55 = arith.divf %53, %54 : vector<1x8xf32>
    %c0_32 = arith.constant 0 : index
    %c0_33 = arith.constant 0 : index
    %56 = vector.load %arg13[%c0_32, %c0_33] : memref<1x8xf32, #tpu.memory_space<vmem>>, vector<1x8xf32>
    tpu.vector_store %arg13[%c0_32, %c0_33], %55 {strides = array<i32>} : memref<1x8xf32, #tpu.memory_space<vmem>>, vector<1x8xf32>,
    return
  }
  func.func @transform_0(%arg0: i32) -> (i32, i32) {
    %c0_i32 = arith.constant 0 : i32
    %c0_i32_0 = arith.constant 0 : i32
    return %c0_i32, %arg0 : i32, i32
  }
  func.func @transform_1(%arg0: i32) -> (i32, i32) {
    %c0_i32 = arith.constant 0 : i32
    %c0_i32_0 = arith.constant 0 : i32
    return %c0_i32, %arg0 : i32, i32
  }
  func.func @transform_2(%arg0: i32) -> (i32, i32) {
    %c0_i32 = arith.constant 0 : i32
    %c0_i32_0 = arith.constant 0 : i32
    %c0_i32_1 = arith.constant 0 : i32
    return %c0_i32, %c0_i32_0 : i32, i32
  }
  func.func @transform_3(%arg0: i32) -> (i32, i32) {
    %c0_i32 = arith.constant 0 : i32
    %c0_i32_0 = arith.constant 0 : i32
    %c0_i32_1 = arith.constant 0 : i32
    return %c0_i32, %c0_i32_0 : i32, i32
  }
  func.func @transform_4(%arg0: i32) -> (i32, i32) {
    %c0_i32 = arith.constant 0 : i32
    %c0_i32_0 = arith.constant 0 : i32
    %c0_i32_1 = arith.constant 0 : i32
    return %c0_i32, %c0_i32_0 : i32, i32
  }
  func.func @transform_5(%arg0: i32) -> (i32, i32) {
    %c0_i32 = arith.constant 0 : i32
    %c0_i32_0 = arith.constant 0 : i32
    %c0_i32_1 = arith.constant 0 : i32
    return %c0_i32, %c0_i32_0 : i32, i32
  }
  func.func @transform_6(%arg0: i32) -> (i32, i32) {
    %c0_i32 = arith.constant 0 : i32
    %c0_i32_0 = arith.constant 0 : i32
    %c0_i32_1 = arith.constant 0 : i32
    return %c0_i32, %c0_i32_0 : i32, i32
  }
  func.func @transform_7(%arg0: i32) -> (i32, i32) {
    %c0_i32 = arith.constant 0 : i32
    %c0_i32_0 = arith.constant 0 : i32
    %c0_i32_1 = arith.constant 0 : i32
    return %c0_i32, %c0_i32_0 : i32, i32
  }
  func.func @transform_8(%arg0: i32) -> (i32, i32) {
    %c0_i32 = arith.constant 0 : i32
    %c0_i32_0 = arith.constant 0 : i32
    %c0_i32_1 = arith.constant 0 : i32
    return %c0_i32, %c0_i32_0 : i32, i32
  }
  func.func @transform_9(%arg0: i32) -> (i32, i32) {
    %c0_i32 = arith.constant 0 : i32
    %c0_i32_0 = arith.constant 0 : i32
    %c0_i32_1 = arith.constant 0 : i32
    return %c0_i32, %c0_i32_0 : i32, i32
  }
  func.func @transform_10(%arg0: i32) -> (i32, i32) {
    %c0_i32 = arith.constant 0 : i32
    %c0_i32_0 = arith.constant 0 : i32
    %c0_i32_1 = arith.constant 0 : i32
    return %c0_i32, %c0_i32_0 : i32, i32
  }
  func.func @transform_11(%arg0: i32) -> (i32, i32) {
    %c0_i32 = arith.constant 0 : i32
    %c0_i32_0 = arith.constant 0 : i32
    %c0_i32_1 = arith.constant 0 : i32
    return %c0_i32, %c0_i32_0 : i32, i32
  }
  func.func @transform_12(%arg0: i32) -> (i32, i32) {
    %c0_i32 = arith.constant 0 : i32
    %c0_i32_0 = arith.constant 0 : i32
    return %c0_i32, %arg0 : i32, i32
  }
}

</mosaic_0001>

<llo_original>
// kernel: tpu_custom_call.1
$region0: #{tpu_custom_call.1}
  #allocation0 [shape = 'u32[]', space=smem, size = 0x4, offset = 0x4, fixed_abs, tag = 'smem constant byte address 0x4 - core index']
  #allocation1 [shape = 'u32[144,128]{1,0:T(1,128)}', space=vmem, size = 0x12000, scoped, tag = 'internal scratch']
  #allocation2 [shape = 'f32[1,1]{1,0:T(1,128)S(1)}', space=vmem, size = 0x200, scoped, tag = 'scoped memory for tpu_custom_call.1']
  %s0 = inlined_call_operand.vmem [shape: s32[1,8], index: 0, kind: input, shape index: {}]
  %s1 = inlined_call_operand.vmem [shape: s32[1,8], index: 1, kind: input, shape index: {}]
  %s2 = inlined_call_operand.vmem [shape: bf16[64,100], index: 2, kind: input, shape index: {}]
  %s3 = inlined_call_operand.vmem [shape: bf16[64,200], index: 3, kind: input, shape index: {}]
  %s4 = inlined_call_operand.vmem [shape: bf16[64,32], index: 4, kind: input, shape index: {}]
  %s5 = inlined_call_operand.vmem [shape: bf16[64,32], index: 5, kind: input, shape index: {}]
  %s6 = inlined_call_operand.vmem [shape: f32[64,1], index: 6, kind: input, shape index: {}]
  %s7 = inlined_call_operand.vmem [shape: bf16[32,64], index: 7, kind: input, shape index: {}]
  %s8 = inlined_call_operand.vmem [shape: f32[32,1], index: 8, kind: input, shape index: {}]
  %s9 = inlined_call_operand.vmem [shape: f32[1,32], index: 9, kind: input, shape index: {}]
  %s10 = inlined_call_operand.vmem [shape: f32[1,32], index: 10, kind: input, shape index: {}]
  %s11 = inlined_call_operand.<no memory space> [shape: f32[1,1], index: 11, kind: input, shape index: {}]
  %s12 = inlined_call_operand.hbm [shape: f32[1,8], index: 12, kind: output, shape index: {}]
  %s13 = sld [smem:[#allocation0]]
  $region58: #{tpu_custom_call.1} parent=0
    _
  %s15 = ssub.s32 1, %s13
  %s16 = scalar_select 0, %s15, %s13
  %v17 = vstv %s11
  %18 = vst [vmem:[#allocation2] sm:$0x1] %v17
  $region1: #{tpu_custom_call.1} parent=0
    #allocation3 [shape = 'u8[512]{0}', space=vmem, size = 0x400, scoped, tag = 'output window, operand 0, single buffered']
    #allocation4 [shape = 's32[1]{0}', space=sflag, size = 0x4, scoped, tag = 'scoped memory for tpu_custom_call.1']
    %19 = vsyncpa [#allocation4], 0
    // Predicated region
    $region2: #{tpu_custom_call.1} parent=1 // pred_check
      _
    $region3: #{tpu_custom_call.1} parent=1 // pred_check_branch
      %21 = sbr.rel (0) target = $region5
    $region4: #{tpu_custom_call.1} parent=1 // pred_region
      _
    $region5: #{tpu_custom_call.1} parent=1 // pred_fallthru
      _
    // Predicated region
    $region6: #{tpu_custom_call.1} parent=1 // pred_check
      _
    $region7: #{tpu_custom_call.1} parent=1 // pred_check_branch
      %23 = sbr.rel (0) target = $region9
    $region8: #{tpu_custom_call.1} parent=1 // pred_region
      _
    $region9: #{tpu_custom_call.1} parent=1 // pred_fallthru
      _
    // Predicated region
    $region10: #{tpu_custom_call.1} parent=1 // pred_check
      _
    $region11: #{tpu_custom_call.1} parent=1 // pred_check_branch
      %25 = sbr.rel (0) target = $region13
    $region12: #{tpu_custom_call.1} parent=1 // pred_region
      _
    $region13: #{tpu_custom_call.1} parent=1 // pred_fallthru
      _
    // Predicated region
    $region14: #{tpu_custom_call.1} parent=1 // pred_check
      _
    $region15: #{tpu_custom_call.1} parent=1 // pred_check_branch
      %27 = sbr.rel (0) target = $region17
    $region16: #{tpu_custom_call.1} parent=1 // pred_region
      _
    $region17: #{tpu_custom_call.1} parent=1 // pred_fallthru
      _
    // Predicated region
    $region18: #{tpu_custom_call.1} parent=1 // pred_check
      _
    $region19: #{tpu_custom_call.1} parent=1 // pred_check_branch
      %29 = sbr.rel (0) target = $region21
    $region20: #{tpu_custom_call.1} parent=1 // pred_region
      _
    $region21: #{tpu_custom_call.1} parent=1 // pred_fallthru
      _
    // Predicated region
    $region22: #{tpu_custom_call.1} parent=1 // pred_check
      _
    $region23: #{tpu_custom_call.1} parent=1 // pred_check_branch
      %31 = sbr.rel (0) target = $region25
    $region24: #{tpu_custom_call.1} parent=1 // pred_region
      _
    $region25: #{tpu_custom_call.1} parent=1 // pred_fallthru
      _
    // Predicated region
    $region26: #{tpu_custom_call.1} parent=1 // pred_check
      _
    $region27: #{tpu_custom_call.1} parent=1 // pred_check_branch
      %33 = sbr.rel (0) target = $region29
    $region28: #{tpu_custom_call.1} parent=1 // pred_region
      _
    $region29: #{tpu_custom_call.1} parent=1 // pred_fallthru
      _
    // Predicated region
    $region30: #{tpu_custom_call.1} parent=1 // pred_check
      _
    $region31: #{tpu_custom_call.1} parent=1 // pred_check_branch
      %35 = sbr.rel (0) target = $region33
    $region32: #{tpu_custom_call.1} parent=1 // pred_region
      _
    $region33: #{tpu_custom_call.1} parent=1 // pred_fallthru
      _
    // Predicated region
    $region34: #{tpu_custom_call.1} parent=1 // pred_check
      _
    $region35: #{tpu_custom_call.1} parent=1 // pred_check_branch
      %37 = sbr.rel (0) target = $region37
    $region36: #{tpu_custom_call.1} parent=1 // pred_region
      _
    $region37: #{tpu_custom_call.1} parent=1 // pred_fallthru
      _
    // Predicated region
    $region38: #{tpu_custom_call.1} parent=1 // pred_check
      _
    $region39: #{tpu_custom_call.1} parent=1 // pred_check_branch
      %39 = sbr.rel (0) target = $region41
    $region40: #{tpu_custom_call.1} parent=1 // pred_region
      _
    $region41: #{tpu_custom_call.1} parent=1 // pred_fallthru
      _
    // Predicated region
    $region42: #{tpu_custom_call.1} parent=1 // pred_check
      _
    $region43: #{tpu_custom_call.1} parent=1 // pred_check_branch
      %41 = sbr.rel (0) target = $region45
    $region44: #{tpu_custom_call.1} parent=1 // pred_region
      _
    $region45: #{tpu_custom_call.1} parent=1 // pred_fallthru
      _
    // Predicated region
    $region46: #{tpu_custom_call.1} parent=1 // pred_check
      _
    $region47: #{tpu_custom_call.1} parent=1 // pred_check_branch
      %43 = sbr.rel (0) target = $region49
    $region48: #{tpu_custom_call.1} parent=1 // pred_region
      _
    $region49: #{tpu_custom_call.1} parent=1 // pred_fallthru
      _
    %v45 = vld [vmem:[%s0] sm:$0x1]
    %v46 = vld [vmem:[%s1] sm:$0x1]
    %v47 = vlaneseq
    %v48 = vshrl.u32 %v47, 7
    %v49 = vadd.s32 %v48, 8
    %v50 = vadd.s32 %v48, 16
    %v51 = vadd.s32 %v48, 24
    %v52 = vadd.s32 %v48, 32
    %v53 = vadd.s32 %v48, 40
    %v54 = vadd.s32 %v48, 48
    %v55 = vadd.s32 %v48, 56
    %v56 = vadd.s32 %v48, 64
    %v57 = vadd.s32 %v48, 72
    %v58 = vadd.s32 %v48, 80
    %v59 = vadd.s32 %v48, 88
    %v60 = vadd.s32 %v48, 96
    %v61 = vlaneseq
    %v62 = vshrl.u32 %v61, 7
    %v63 = vsub.s32 0, %v62
    %v64 = vrot.slane %v45, %v63
    %vm65 = vcmp.eq.s32.totalorder %v48, %v64
    %vm66 = vcmp.eq.s32.totalorder %v49, %v64
    %vm67 = vcmp.eq.s32.totalorder %v50, %v64
    %vm68 = vcmp.eq.s32.totalorder %v51, %v64
    %vm69 = vcmp.eq.s32.totalorder %v52, %v64
    %vm70 = vcmp.eq.s32.totalorder %v53, %v64
    %vm71 = vcmp.eq.s32.totalorder %v54, %v64
    %vm72 = vcmp.eq.s32.totalorder %v55, %v64
    %vm73 = vcmp.eq.s32.totalorder %v56, %v64
    %vm74 = vcmp.eq.s32.totalorder %v57, %v64
    %vm75 = vcmp.eq.s32.totalorder %v58, %v64
    %vm76 = vcmp.eq.s32.totalorder %v59, %v64
    %vm77 = vcmp.eq.s32.totalorder %v60, %v64
    %v78 = vsel %vm65, 1, 0
    %v79 = vsel %vm66, 1, 0
    %v80 = vsel %vm67, 1, 0
    %v81 = vsel %vm68, 1, 0
    %v82 = vsel %vm69, 1, 0
    %v83 = vsel %vm70, 1, 0
    %v84 = vsel %vm71, 1, 0
    %v85 = vsel %vm72, 1, 0
    %v86 = vsel %vm73, 1, 0
    %v87 = vsel %vm74, 1, 0
    %v88 = vsel %vm75, 1, 0
    %v89 = vsel %vm76, 1, 0
    %v90 = vsel %vm77, 1, 0
    %v91 = vcvt.s32.f32 %v78
    %v92 = vcvt.s32.f32 %v79
    %v93 = vcvt.s32.f32 %v80
    %v94 = vcvt.s32.f32 %v81
    %v95 = vcvt.s32.f32 %v82
    %v96 = vcvt.s32.f32 %v83
    %v97 = vcvt.s32.f32 %v84
    %v98 = vcvt.s32.f32 %v85
    %v99 = vcvt.s32.f32 %v86
    %v100 = vcvt.s32.f32 %v87
    %v101 = vcvt.s32.f32 %v88
    %v102 = vcvt.s32.f32 %v89
    %v103 = vcvt.s32.f32 %v90
    %v104 = vpack.c.bf16 %v92, %v91
    %v105 = vpack.c.bf16 %v94, %v93
    %v106 = vpack.c.bf16 %v96, %v95
    %v107 = vpack.c.bf16 %v98, %v97
    %v108 = vpack.c.bf16 %v100, %v99
    %v109 = vpack.c.bf16 %v102, %v101
    %v110 = vpack.c.bf16 %v103, %v103
    %v111 = vadd.s32 %v48, 104
    %v112 = vadd.s32 %v48, 112
    %v113 = vadd.s32 %v48, 120
    %v114 = vadd.s32 %v48, 128
    %v115 = vadd.s32 %v48, 136
    %v116 = vadd.s32 %v48, 144
    %v117 = vadd.s32 %v48, 152
    %v118 = vadd.s32 %v48, 160
    %v119 = vadd.s32 %v48, 168
    %v120 = vadd.s32 %v48, 176
    %v121 = vadd.s32 %v48, 184
    %v122 = vadd.s32 %v48, 192
    %v123 = vlaneseq
    %v124 = vshrl.u32 %v123, 7
    %v125 = vsub.s32 0, %v124
    %v126 = vrot.slane %v46, %v125
    %vm127 = vcmp.eq.s32.totalorder %v48, %v126
    %vm128 = vcmp.eq.s32.totalorder %v49, %v126
    %vm129 = vcmp.eq.s32.totalorder %v50, %v126
    %vm130 = vcmp.eq.s32.totalorder %v51, %v126
    %vm131 = vcmp.eq.s32.totalorder %v52, %v126
    %vm132 = vcmp.eq.s32.totalorder %v53, %v126
    %vm133 = vcmp.eq.s32.totalorder %v54, %v126
    %vm134 = vcmp.eq.s32.totalorder %v55, %v126
    %vm135 = vcmp.eq.s32.totalorder %v56, %v126
    %vm136 = vcmp.eq.s32.totalorder %v57, %v126
    %vm137 = vcmp.eq.s32.totalorder %v58, %v126
    %vm138 = vcmp.eq.s32.totalorder %v59, %v126
    %vm139 = vcmp.eq.s32.totalorder %v60, %v126
    %vm140 = vcmp.eq.s32.totalorder %v111, %v126
    %vm141 = vcmp.eq.s32.totalorder %v112, %v126
    %vm142 = vcmp.eq.s32.totalorder %v113, %v126
    %vm143 = vcmp.eq.s32.totalorder %v114, %v126
    %vm144 = vcmp.eq.s32.totalorder %v115, %v126
    %vm145 = vcmp.eq.s32.totalorder %v116, %v126
    %vm146 = vcmp.eq.s32.totalorder %v117, %v126
    %vm147 = vcmp.eq.s32.totalorder %v118, %v126
    %vm148 = vcmp.eq.s32.totalorder %v119, %v126
    %vm149 = vcmp.eq.s32.totalorder %v120, %v126
    %vm150 = vcmp.eq.s32.totalorder %v121, %v126
    %vm151 = vcmp.eq.s32.totalorder %v122, %v126
    %v152 = vsel %vm127, 1, 0
    %v153 = vsel %vm128, 1, 0
    %v154 = vsel %vm129, 1, 0
    %v155 = vsel %vm130, 1, 0
    %v156 = vsel %vm131, 1, 0
    %v157 = vsel %vm132, 1, 0
    %v158 = vsel %vm133, 1, 0
    %v159 = vsel %vm134, 1, 0
    %v160 = vsel %vm135, 1, 0
    %v161 = vsel %vm136, 1, 0
    %v162 = vsel %vm137, 1, 0
    %v163 = vsel %vm138, 1, 0
    %v164 = vsel %vm139, 1, 0
    %v165 = vsel %vm140, 1, 0
    %v166 = vsel %vm141, 1, 0
    %v167 = vsel %vm142, 1, 0
    %v168 = vsel %vm143, 1, 0
    %v169 = vsel %vm144, 1, 0
    %v170 = vsel %vm145, 1, 0
    %v171 = vsel %vm146, 1, 0
    %v172 = vsel %vm147, 1, 0
    %v173 = vsel %vm148, 1, 0
    %v174 = vsel %vm149, 1, 0
    %v175 = vsel %vm150, 1, 0
    %v176 = vsel %vm151, 1, 0
    %v177 = vcvt.s32.f32 %v152
    %v178 = vcvt.s32.f32 %v153
    %v179 = vcvt.s32.f32 %v154
    %v180 = vcvt.s32.f32 %v155
    %v181 = vcvt.s32.f32 %v156
    %v182 = vcvt.s32.f32 %v157
    %v183 = vcvt.s32.f32 %v158
    %v184 = vcvt.s32.f32 %v159
    %v185 = vcvt.s32.f32 %v160
    %v186 = vcvt.s32.f32 %v161
    %v187 = vcvt.s32.f32 %v162
    %v188 = vcvt.s32.f32 %v163
    %v189 = vcvt.s32.f32 %v164
    %v190 = vcvt.s32.f32 %v165
    %v191 = vcvt.s32.f32 %v166
    %v192 = vcvt.s32.f32 %v167
    %v193 = vcvt.s32.f32 %v168
    %v194 = vcvt.s32.f32 %v169
    %v195 = vcvt.s32.f32 %v170
    %v196 = vcvt.s32.f32 %v171
    %v197 = vcvt.s32.f32 %v172
    %v198 = vcvt.s32.f32 %v173
    %v199 = vcvt.s32.f32 %v174
    %v200 = vcvt.s32.f32 %v175
    %v201 = vcvt.s32.f32 %v176
    %v202 = vpack.c.bf16 %v178, %v177
    %v203 = vpack.c.bf16 %v180, %v179
    %v204 = vpack.c.bf16 %v182, %v181
    %v205 = vpack.c.bf16 %v184, %v183
    %v206 = vpack.c.bf16 %v186, %v185
    %v207 = vpack.c.bf16 %v188, %v187
    %v208 = vpack.c.bf16 %v190, %v189
    %v209 = vpack.c.bf16 %v192, %v191
    %v210 = vpack.c.bf16 %v194, %v193
    %v211 = vpack.c.bf16 %v196, %v195
    %v212 = vpack.c.bf16 %v198, %v197
    %v213 = vpack.c.bf16 %v200, %v199
    %v214 = vpack.c.bf16 %v201, %v201
    %v215 = vld [vmem:[%s2] sm:$0xf]
    %v216 = vld [vmem:[%s2 + $0x4] sm:$0xf]
    %v217 = vld [vmem:[%s2 + $0x8] sm:$0xf]
    %v218 = vld [vmem:[%s2 + $0xc] sm:$0xf]
    %v219 = vld [vmem:[%s2 + $0x10] sm:$0xf]
    %v220 = vld [vmem:[%s2 + $0x14] sm:$0xf]
    %v221 = vld [vmem:[%s2 + $0x18] sm:$0xf]
    %v222 = vld [vmem:[%s2 + $0x1c] sm:$0xf]
    %v231 = vunpack.c.l.b16 %v215
    %v232 = vunpack.c.l.b16 %v216
    %v233 = vunpack.c.l.b16 %v217
    %v234 = vunpack.c.l.b16 %v218
    %v235 = vunpack.c.l.b16 %v219
    %v236 = vunpack.c.l.b16 %v220
    %v237 = vunpack.c.l.b16 %v221
    %v238 = vunpack.c.l.b16 %v222
    %v239 = vpack.c.b16 %v232, %v231
    %v240 = vpack.c.b16 %v234, %v233
    %v241 = vpack.c.b16 %v236, %v235
    %v242 = vpack.c.b16 %v238, %v237
    %vm243 = vcmask 818176
    %v245 = vsel %vm243, %v239, 0
    %v248 = vsel %vm243, %v240, 0
    %v251 = vsel %vm243, %v241, 0
    %v254 = vsel %vm243, %v242, 0
    %vm256 = vcmask 1041408
    %v258 = vsel %vm256, %v110, 0
    %260 = vmatprep.subr.bf16.mxu0 0
    %261 = vmatpush1.bf16.msra.mxu0 %v104
    %262 = vmatprep.subr.bf16.mxu0 0
    %263 = vmatpush1.bf16.msra.mxu0 %v105
    %264 = vmatprep.subr.bf16.mxu0 0
    %265 = vmatpush1.bf16.msra.mxu0 %v106
    %266 = vmatprep.subr.bf16.mxu0 0
    %267 = vmatpush1.bf16.msra.mxu0 %v107
    %268 = vmatprep.subr.bf16.mxu0 0
    %269 = vmatpush1.bf16.msra.mxu0 %v108
    %270 = vmatprep.subr.bf16.mxu0 0
    %271 = vmatpush1.bf16.msra.mxu0 %v109
    %272 = vmatprep.subr.bf16.mxu0 0
    %273 = vmatpush1.bf16.msra.mxu0 %v258
    %274 = vmatprep.subr.bf16.mxu0 0
    %275 = vmatpush1.bf16.msra.mxu0 0
    %276 = vmatprep.subr.bf16.mxu0 0
    %277 = vmatpush1.bf16.msra.mxu0 0
    %278 = vmatprep.subr.bf16.mxu0 0
    %279 = vmatpush1.bf16.msra.mxu0 0
    %280 = vmatprep.subr.bf16.mxu0 0
    %281 = vmatpush1.bf16.msra.mxu0 0
    %282 = vmatprep.subr.bf16.mxu0 0
    %283 = vmatpush1.bf16.msra.mxu0 0
    %284 = vmatprep.subr.bf16.mxu0 0
    %285 = vmatpush1.bf16.msra.mxu0 0
    %286 = vmatprep.subr.bf16.mxu0 0
    %287 = vmatpush1.bf16.msra.mxu0 0
    %288 = vmatprep.subr.bf16.mxu0 0
    %289 = vmatpush1.bf16.msra.mxu0 0
    %290 = vmatprep.subr.bf16.mxu0 0
    %291 = vmatpush1.bf16.msra.mxu0 0
    %292 = vmatprep.mubr.bf16.mxu0 0
    %293 = vmatmul.mubr.bf16.gmra.mrb[0].mxu0 %v245
    %v294 = vpop.f32.mrb[0].mxu0
    %v295 = vadd.f32 0.0, %v294
    %v296 = vpop.f32.mrb[0].mxu0
    %v297 = vpop.f32.mrb[0].mxu0
    %v298 = vadd.f32 0.0, %v297
    %v299 = vpop.f32.mrb[0].mxu0
    %300 = vmatprep.mubr.bf16.mxu0 0
    %301 = vmatmul.mubr.bf16.gmra.mrb[0].mxu0 %v248
    %v302 = vpop.f32.mrb[0].mxu0
    %v303 = vadd.f32 0.0, %v302
    %v304 = vpop.f32.mrb[0].mxu0
    %v305 = vpop.f32.mrb[0].mxu0
    %v306 = vadd.f32 0.0, %v305
    %v307 = vpop.f32.mrb[0].mxu0
    %308 = vmatprep.mubr.bf16.mxu0 0
    %309 = vmatmul.mubr.bf16.gmra.mrb[0].mxu0 %v251
    %v310 = vpop.f32.mrb[0].mxu0
    %v311 = vadd.f32 0.0, %v310
    %v312 = vpop.f32.mrb[0].mxu0
    %v313 = vpop.f32.mrb[0].mxu0
    %v314 = vadd.f32 0.0, %v313
    %v315 = vpop.f32.mrb[0].mxu0
    %316 = vmatprep.mubr.bf16.mxu0 0
    %317 = vmatmul.mubr.bf16.gmra.mrb[0].mxu0 %v254
    %v318 = vpop.f32.mrb[0].mxu0
    %v319 = vadd.f32 0.0, %v318
    %v320 = vpop.f32.mrb[0].mxu0
    %v321 = vpop.f32.mrb[0].mxu0
    %v322 = vadd.f32 0.0, %v321
    %v323 = vpop.f32.mrb[0].mxu0
    %324 = vdwg.mxu0
    %v325 = vld [vmem:[%s3] sm:$0xff]
    %v326 = vld [vmem:[%s3 + $0x8] sm:$0xff]
    %v327 = vld [vmem:[%s3 + $0x10] sm:$0xff]
    %v328 = vld [vmem:[%s3 + $0x18] sm:$0xff]
    %v329 = vld [vmem:[%s3 + $0x20] sm:$0xff]
    %v330 = vld [vmem:[%s3 + $0x28] sm:$0xff]
    %v331 = vld [vmem:[%s3 + $0x30] sm:$0xff]
    %v332 = vld [vmem:[%s3 + $0x38] sm:$0xff]
    %v341 = vunpack.c.l.b16 %v325
    %v342 = vunpack.c.h.b16 %v325
    %v343 = vunpack.c.l.b16 %v326
    %v344 = vunpack.c.h.b16 %v326
    %v345 = vunpack.c.l.b16 %v327
    %v346 = vunpack.c.h.b16 %v327
    %v347 = vunpack.c.l.b16 %v328
    %v348 = vunpack.c.h.b16 %v328
    %v349 = vunpack.c.l.b16 %v329
    %v350 = vunpack.c.h.b16 %v329
    %v351 = vunpack.c.l.b16 %v330
    %v352 = vunpack.c.h.b16 %v330
    %v353 = vunpack.c.l.b16 %v331
    %v354 = vunpack.c.h.b16 %v331
    %v355 = vunpack.c.l.b16 %v332
    %v356 = vunpack.c.h.b16 %v332
    %v357 = vpack.c.b16 %v343, %v341
    %v358 = vpack.c.b16 %v344, %v342
    %v359 = vpack.c.b16 %v347, %v345
    %v360 = vpack.c.b16 %v348, %v346
    %v361 = vpack.c.b16 %v351, %v349
    %v362 = vpack.c.b16 %v352, %v350
    %v363 = vpack.c.b16 %v355, %v353
    %v364 = vpack.c.b16 %v356, %v354
    %vm369 = vcmask 588800
    %v371 = vsel %vm369, %v358, 0
    %v374 = vsel %vm369, %v360, 0
    %v377 = vsel %vm369, %v362, 0
    %v380 = vsel %vm369, %v364, 0
    %vm382 = vcmask 1043456
    %v384 = vsel %vm382, %v214, 0
    %386 = vmatprep.subr.bf16.mxu0 0
    %387 = vmatpush1.bf16.msra.mxu0 %v202
    %388 = vmatprep.subr.bf16.mxu0 0
    %389 = vmatpush1.bf16.msra.mxu0 %v203
    %390 = vmatprep.subr.bf16.mxu0 0
    %391 = vmatpush1.bf16.msra.mxu0 %v204
    %392 = vmatprep.subr.bf16.mxu0 0
    %393 = vmatpush1.bf16.msra.mxu0 %v205
    %394 = vmatprep.subr.bf16.mxu0 0
    %395 = vmatpush1.bf16.msra.mxu0 %v206
    %396 = vmatprep.subr.bf16.mxu0 0
    %397 = vmatpush1.bf16.msra.mxu0 %v207
    %398 = vmatprep.subr.bf16.mxu0 0
    %399 = vmatpush1.bf16.msra.mxu0 %v208
    %400 = vmatprep.subr.bf16.mxu0 0
    %401 = vmatpush1.bf16.msra.mxu0 %v209
    %402 = vmatprep.subr.bf16.mxu0 0
    %403 = vmatpush1.bf16.msra.mxu0 %v210
    %404 = vmatprep.subr.bf16.mxu0 0
    %405 = vmatpush1.bf16.msra.mxu0 %v211
    %406 = vmatprep.subr.bf16.mxu0 0
    %407 = vmatpush1.bf16.msra.mxu0 %v212
    %408 = vmatprep.subr.bf16.mxu0 0
    %409 = vmatpush1.bf16.msra.mxu0 %v213
    %410 = vmatprep.subr.bf16.mxu0 0
    %411 = vmatpush1.bf16.msra.mxu0 %v384
    %412 = vmatprep.subr.bf16.mxu0 0
    %413 = vmatpush1.bf16.msra.mxu0 0
    %414 = vmatprep.subr.bf16.mxu0 0
    %415 = vmatpush1.bf16.msra.mxu0 0
    %416 = vmatprep.subr.bf16.mxu0 0
    %417 = vmatpush1.bf16.msra.mxu0 0
    %418 = vmatprep.mubr.bf16.mxu0 %v371
    %419 = vmatmul.mubr.bf16.gmra.mrb[0].mxu0 %v357
    %v420 = vpop.f32.mrb[0].mxu0
    %v421 = vadd.f32 0.0, %v420
    %v422 = vpop.f32.mrb[0].mxu0
    %v423 = vpop.f32.mrb[0].mxu0
    %v424 = vadd.f32 0.0, %v423
    %v425 = vpop.f32.mrb[0].mxu0
    %426 = vmatprep.mubr.bf16.mxu0 %v374
    %427 = vmatmul.mubr.bf16.gmra.mrb[0].mxu0 %v359
    %v428 = vpop.f32.mrb[0].mxu0
    %v429 = vadd.f32 0.0, %v428
    %v430 = vpop.f32.mrb[0].mxu0
    %v431 = vpop.f32.mrb[0].mxu0
    %v432 = vadd.f32 0.0, %v431
    %v433 = vpop.f32.mrb[0].mxu0
    %434 = vmatprep.mubr.bf16.mxu0 %v377
    %435 = vmatmul.mubr.bf16.gmra.mrb[0].mxu0 %v361
    %v436 = vpop.f32.mrb[0].mxu0
    %v437 = vadd.f32 0.0, %v436
    %v438 = vpop.f32.mrb[0].mxu0
    %v439 = vpop.f32.mrb[0].mxu0
    %v440 = vadd.f32 0.0, %v439
    %v441 = vpop.f32.mrb[0].mxu0
    %442 = vmatprep.mubr.bf16.mxu0 %v380
    %443 = vmatmul.mubr.bf16.gmra.mrb[0].mxu0 %v363
    %v444 = vpop.f32.mrb[0].mxu0
    %v445 = vadd.f32 0.0, %v444
    %v446 = vpop.f32.mrb[0].mxu0
    %v447 = vpop.f32.mrb[0].mxu0
    %v448 = vadd.f32 0.0, %v447
    %v449 = vpop.f32.mrb[0].mxu0
    %450 = vdwg.mxu0
    %v451 = vmul.f32 %v295, %v421
    %v452 = vmul.f32 %v298, %v424
    %v453 = vmul.f32 %v303, %v429
    %v454 = vmul.f32 %v306, %v432
    %v455 = vld [vmem:[%s4] sm:$0xf]
    %v456 = vld [vmem:[%s4 + $0x4] sm:$0xf]
    %v457 = vld [vmem:[%s4 + $0x8] sm:$0xf]
    %v458 = vld [vmem:[%s4 + $0xc] sm:$0xf]
    %v459 = vld [vmem:[%s4 + $0x10] sm:$0xf]
    %v460 = vld [vmem:[%s4 + $0x14] sm:$0xf]
    %v461 = vld [vmem:[%s4 + $0x18] sm:$0xf]
    %v462 = vld [vmem:[%s4 + $0x1c] sm:$0xf]
    %v463 = vpack.c.bf16 %v314, %v311
    %v464 = vpack.c.bf16 %v322, %v319
    %v465 = vld [vmem:[%s5] sm:$0xf]
    %v466 = vld [vmem:[%s5 + $0x4] sm:$0xf]
    %v467 = vld [vmem:[%s5 + $0x8] sm:$0xf]
    %v468 = vld [vmem:[%s5 + $0xc] sm:$0xf]
    %v469 = vld [vmem:[%s5 + $0x10] sm:$0xf]
    %v470 = vld [vmem:[%s5 + $0x14] sm:$0xf]
    %v471 = vld [vmem:[%s5 + $0x18] sm:$0xf]
    %v472 = vld [vmem:[%s5 + $0x1c] sm:$0xf]
    %v473 = vpack.c.bf16 %v440, %v437
    %v474 = vpack.c.bf16 %v448, %v445
    %v483 = vunpack.c.l.b16 %v465
    %v484 = vunpack.c.l.b16 %v466
    %v485 = vunpack.c.l.b16 %v467
    %v486 = vunpack.c.l.b16 %v468
    %v487 = vunpack.c.l.b16 %v469
    %v488 = vunpack.c.l.b16 %v470
    %v489 = vunpack.c.l.b16 %v471
    %v490 = vunpack.c.l.b16 %v472
    %v491 = vpack.c.b16 %v484, %v483
    %v492 = vpack.c.b16 %v486, %v485
    %v493 = vpack.c.b16 %v488, %v487
    %v494 = vpack.c.b16 %v490, %v489
    %vm495 = vcmask 261120
    %v497 = vsel %vm495, %v491, 0
    %v500 = vsel %vm495, %v492, 0
    %v503 = vsel %vm495, %v493, 0
    %v506 = vsel %vm495, %v494, 0
    %508 = vmatprep.subr.bf16.mxu0 0
    %509 = vmatpush1.bf16.msra.mxu0 %v473
    %510 = vmatprep.subr.bf16.mxu0 0
    %511 = vmatpush1.bf16.msra.mxu0 %v474
    %512 = vmatprep.subr.bf16.mxu0 0
    %513 = vmatpush1.bf16.msra.mxu0 0
    %514 = vmatprep.subr.bf16.mxu0 0
    %515 = vmatpush1.bf16.msra.mxu0 0
    %516 = vmatprep.subr.bf16.mxu0 0
    %517 = vmatpush1.bf16.msra.mxu0 0
    %518 = vmatprep.subr.bf16.mxu0 0
    %519 = vmatpush1.bf16.msra.mxu0 0
    %520 = vmatprep.subr.bf16.mxu0 0
    %521 = vmatpush1.bf16.msra.mxu0 0
    %522 = vmatprep.subr.bf16.mxu0 0
    %523 = vmatpush1.bf16.msra.mxu0 0
    %524 = vmatprep.subr.bf16.mxu0 0
    %525 = vmatpush1.bf16.msra.mxu0 0
    %526 = vmatprep.subr.bf16.mxu0 0
    %527 = vmatpush1.bf16.msra.mxu0 0
    %528 = vmatprep.subr.bf16.mxu0 0
    %529 = vmatpush1.bf16.msra.mxu0 0
    %530 = vmatprep.subr.bf16.mxu0 0
    %531 = vmatpush1.bf16.msra.mxu0 0
    %532 = vmatprep.subr.bf16.mxu0 0
    %533 = vmatpush1.bf16.msra.mxu0 0
    %534 = vmatprep.subr.bf16.mxu0 0
    %535 = vmatpush1.bf16.msra.mxu0 0
    %536 = vmatprep.subr.bf16.mxu0 0
    %537 = vmatpush1.bf16.msra.mxu0 0
    %538 = vmatprep.subr.bf16.mxu0 0
    %539 = vmatpush1.bf16.msra.mxu0 0
    %540 = vmatprep.mubr.bf16.mxu0 0
    %541 = vmatmul.mubr.bf16.gmra.mrb[0].mxu0 %v497
    %v542 = vpop.f32.mrb[0].mxu0
    %v543 = vadd.f32 0.0, %v542
    %v544 = vpop.f32.mrb[0].mxu0
    %v545 = vpop.f32.mrb[0].mxu0
    %v546 = vadd.f32 0.0, %v545
    %v547 = vpop.f32.mrb[0].mxu0
    %548 = vmatprep.mubr.bf16.mxu0 0
    %549 = vmatmul.mubr.bf16.gmra.mrb[0].mxu0 %v500
    %v550 = vpop.f32.mrb[0].mxu0
    %v551 = vadd.f32 0.0, %v550
    %v552 = vpop.f32.mrb[0].mxu0
    %v553 = vpop.f32.mrb[0].mxu0
    %v554 = vadd.f32 0.0, %v553
    %v555 = vpop.f32.mrb[0].mxu0
    %556 = vmatprep.mubr.bf16.mxu0 0
    %557 = vmatmul.mubr.bf16.gmra.mrb[0].mxu0 %v503
    %v558 = vpop.f32.mrb[0].mxu0
    %v559 = vadd.f32 0.0, %v558
    %v560 = vpop.f32.mrb[0].mxu0
    %v561 = vpop.f32.mrb[0].mxu0
    %v562 = vadd.f32 0.0, %v561
    %v563 = vpop.f32.mrb[0].mxu0
    %564 = vmatprep.mubr.bf16.mxu0 0
    %565 = vmatmul.mubr.bf16.gmra.mrb[0].mxu0 %v506
    %v566 = vpop.f32.mrb[0].mxu0
    %v567 = vadd.f32 0.0, %v566
    %v568 = vpop.f32.mrb[0].mxu0
    %v569 = vpop.f32.mrb[0].mxu0
    %v570 = vadd.f32 0.0, %v569
    %v571 = vpop.f32.mrb[0].mxu0
    %572 = vdwg.mxu0
    %v581 = vunpack.c.l.b16 %v455
    %v582 = vunpack.c.l.b16 %v456
    %v583 = vunpack.c.l.b16 %v457
    %v584 = vunpack.c.l.b16 %v458
    %v585 = vunpack.c.l.b16 %v459
    %v586 = vunpack.c.l.b16 %v460
    %v587 = vunpack.c.l.b16 %v461
    %v588 = vunpack.c.l.b16 %v462
    %v589 = vpack.c.b16 %v582, %v581
    %v590 = vpack.c.b16 %v584, %v583
    %v591 = vpack.c.b16 %v586, %v585
    %v592 = vpack.c.b16 %v588, %v587
    %v594 = vsel %vm495, %v589, 0
    %v597 = vsel %vm495, %v590, 0
    %v600 = vsel %vm495, %v591, 0
    %v603 = vsel %vm495, %v592, 0
    %605 = vmatprep.subr.bf16.mxu0 0
    %606 = vmatpush1.bf16.msra.mxu0 %v463
    %607 = vmatprep.subr.bf16.mxu0 0
    %608 = vmatpush1.bf16.msra.mxu0 %v464
    %609 = vmatprep.subr.bf16.mxu0 0
    %610 = vmatpush1.bf16.msra.mxu0 0
    %611 = vmatprep.subr.bf16.mxu0 0
    %612 = vmatpush1.bf16.msra.mxu0 0
    %613 = vmatprep.subr.bf16.mxu0 0
    %614 = vmatpush1.bf16.msra.mxu0 0
    %615 = vmatprep.subr.bf16.mxu0 0
    %616 = vmatpush1.bf16.msra.mxu0 0
    %617 = vmatprep.subr.bf16.mxu0 0
    %618 = vmatpush1.bf16.msra.mxu0 0
    %619 = vmatprep.subr.bf16.mxu0 0
    %620 = vmatpush1.bf16.msra.mxu0 0
    %621 = vmatprep.subr.bf16.mxu0 0
    %622 = vmatpush1.bf16.msra.mxu0 0
    %623 = vmatprep.subr.bf16.mxu0 0
    %624 = vmatpush1.bf16.msra.mxu0 0
    %625 = vmatprep.subr.bf16.mxu0 0
    %626 = vmatpush1.bf16.msra.mxu0 0
    %627 = vmatprep.subr.bf16.mxu0 0
    %628 = vmatpush1.bf16.msra.mxu0 0
    %629 = vmatprep.subr.bf16.mxu0 0
    %630 = vmatpush1.bf16.msra.mxu0 0
    %631 = vmatprep.subr.bf16.mxu0 0
    %632 = vmatpush1.bf16.msra.mxu0 0
    %633 = vmatprep.subr.bf16.mxu0 0
    %634 = vmatpush1.bf16.msra.mxu0 0
    %635 = vmatprep.subr.bf16.mxu0 0
    %636 = vmatpush1.bf16.msra.mxu0 0
    %637 = vmatprep.mubr.bf16.mxu0 0
    %638 = vmatmul.mubr.bf16.gmra.mrb[0].mxu0 %v594
    %v639 = vpop.f32.mrb[0].mxu0
    %v640 = vadd.f32 %v543, %v639
    %v641 = vpop.f32.mrb[0].mxu0
    %v642 = vpop.f32.mrb[0].mxu0
    %v643 = vadd.f32 %v546, %v642
    %v644 = vpop.f32.mrb[0].mxu0
    %645 = vmatprep.mubr.bf16.mxu0 0
    %646 = vmatmul.mubr.bf16.gmra.mrb[0].mxu0 %v597
    %v647 = vpop.f32.mrb[0].mxu0
    %v648 = vadd.f32 %v551, %v647
    %v649 = vpop.f32.mrb[0].mxu0
    %v650 = vpop.f32.mrb[0].mxu0
    %v651 = vadd.f32 %v554, %v650
    %v652 = vpop.f32.mrb[0].mxu0
    %653 = vmatprep.mubr.bf16.mxu0 0
    %654 = vmatmul.mubr.bf16.gmra.mrb[0].mxu0 %v600
    %v655 = vpop.f32.mrb[0].mxu0
    %v656 = vadd.f32 %v559, %v655
    %v657 = vpop.f32.mrb[0].mxu0
    %v658 = vpop.f32.mrb[0].mxu0
    %v659 = vadd.f32 %v562, %v658
    %v660 = vpop.f32.mrb[0].mxu0
    %661 = vmatprep.mubr.bf16.mxu0 0
    %662 = vmatmul.mubr.bf16.gmra.mrb[0].mxu0 %v603
    %v663 = vpop.f32.mrb[0].mxu0
    %v664 = vadd.f32 %v567, %v663
    %v665 = vpop.f32.mrb[0].mxu0
    %v666 = vpop.f32.mrb[0].mxu0
    %v667 = vadd.f32 %v570, %v666
    %v668 = vpop.f32.mrb[0].mxu0
    %669 = vdwg.mxu0
    %v670 = vld [vmem:[%s6] sm:$0xff]
    %v671 = vld [vmem:[%s6 + $0x8] sm:$0xff]
    %v672 = vld [vmem:[%s6 + $0x10] sm:$0xff]
    %v673 = vld [vmem:[%s6 + $0x18] sm:$0xff]
    %v674 = vld [vmem:[%s6 + $0x20] sm:$0xff]
    %v675 = vld [vmem:[%s6 + $0x28] sm:$0xff]
    %v676 = vld [vmem:[%s6 + $0x30] sm:$0xff]
    %v677 = vld [vmem:[%s6 + $0x38] sm:$0xff]
    %679 = vset.pattern.permute.xlu0 0
    %680 = vperm.xlu0 %679, %v670
    %v681 = vpop.permute.xlu0 %680
    %684 = vset.pattern.permute.xlu0 0
    %685 = vperm.xlu0 %684, %v671
    %v686 = vpop.permute.xlu0 %685
    %689 = vset.pattern.permute.xlu0 0
    %690 = vperm.xlu0 %689, %v672
    %v691 = vpop.permute.xlu0 %690
    %694 = vset.pattern.permute.xlu0 0
    %695 = vperm.xlu0 %694, %v673
    %v696 = vpop.permute.xlu0 %695
    %699 = vset.pattern.permute.xlu0 0
    %700 = vperm.xlu0 %699, %v674
    %v701 = vpop.permute.xlu0 %700
    %704 = vset.pattern.permute.xlu0 0
    %705 = vperm.xlu0 %704, %v675
    %v706 = vpop.permute.xlu0 %705
    %709 = vset.pattern.permute.xlu0 0
    %710 = vperm.xlu0 %709, %v676
    %v711 = vpop.permute.xlu0 %710
    %714 = vset.pattern.permute.xlu0 0
    %715 = vperm.xlu0 %714, %v677
    %v716 = vpop.permute.xlu0 %715
    %v718 = vadd.f32 %v640, %v681
    %v719 = vadd.f32 %v643, %v686
    %v720 = vadd.f32 %v648, %v691
    %v721 = vadd.f32 %v651, %v696
    %v722 = vadd.f32 %v656, %v701
    %v723 = vadd.f32 %v659, %v706
    %v724 = vadd.f32 %v664, %v711
    %v725 = vadd.f32 %v667, %v716
    %v726 = vmax.f32 %v718, 0.0
    %v727 = vmax.f32 %v719, 0.0
    %v728 = vmax.f32 %v720, 0.0
    %v729 = vmax.f32 %v721, 0.0
    %v730 = vmax.f32 %v722, 0.0
    %v731 = vmax.f32 %v723, 0.0
    %v732 = vmax.f32 %v724, 0.0
    %v733 = vmax.f32 %v725, 0.0
    %v734 = vld [vmem:[%s7] sm:$0xf]
    %v735 = vld [vmem:[%s7 + $0x4] sm:$0xf]
    %v736 = vld [vmem:[%s7 + $0x8] sm:$0xf]
    %v737 = vld [vmem:[%s7 + $0xc] sm:$0xf]
    %v738 = vpack.c.bf16 %v727, %v726
    %v739 = vpack.c.bf16 %v729, %v728
    %v740 = vpack.c.bf16 %v731, %v730
    %v741 = vpack.c.bf16 %v733, %v732
    %v742 = vld [vmem:[%s8] sm:$0xff]
    %v743 = vld [vmem:[%s8 + $0x8] sm:$0xff]
    %v744 = vld [vmem:[%s8 + $0x10] sm:$0xff]
    %v745 = vld [vmem:[%s8 + $0x18] sm:$0xff]
    %747 = vset.pattern.permute.xlu0 0
    %748 = vperm.xlu0 %747, %v742
    %v749 = vpop.permute.xlu0 %748
    %752 = vset.pattern.permute.xlu0 0
    %753 = vperm.xlu0 %752, %v743
    %v754 = vpop.permute.xlu0 %753
    %757 = vset.pattern.permute.xlu0 0
    %758 = vperm.xlu0 %757, %v744
    %v759 = vpop.permute.xlu0 %758
    %762 = vset.pattern.permute.xlu0 0
    %763 = vperm.xlu0 %762, %v745
    %v764 = vpop.permute.xlu0 %763
    %v770 = vunpack.c.l.b16 %v734
    %v771 = vunpack.c.l.b16 %v735
    %v772 = vunpack.c.l.b16 %v736
    %v773 = vunpack.c.l.b16 %v737
    %v774 = vpack.c.b16 %v771, %v770
    %v775 = vpack.c.b16 %v773, %v772
    %vm776 = vcmask 523264
    %v778 = vsel %vm776, %v774, 0
    %v781 = vsel %vm776, %v775, 0
    %783 = vmatprep.subr.bf16.mxu0 0
    %784 = vmatpush1.bf16.msra.mxu0 %v738
    %785 = vmatprep.subr.bf16.mxu0 0
    %786 = vmatpush1.bf16.msra.mxu0 %v739
    %787 = vmatprep.subr.bf16.mxu0 0
    %788 = vmatpush1.bf16.msra.mxu0 %v740
    %789 = vmatprep.subr.bf16.mxu0 0
    %790 = vmatpush1.bf16.msra.mxu0 %v741
    %791 = vmatprep.subr.bf16.mxu0 0
    %792 = vmatpush1.bf16.msra.mxu0 0
    %793 = vmatprep.subr.bf16.mxu0 0
    %794 = vmatpush1.bf16.msra.mxu0 0
    %795 = vmatprep.subr.bf16.mxu0 0
    %796 = vmatpush1.bf16.msra.mxu0 0
    %797 = vmatprep.subr.bf16.mxu0 0
    %798 = vmatpush1.bf16.msra.mxu0 0
    %799 = vmatprep.subr.bf16.mxu0 0
    %800 = vmatpush1.bf16.msra.mxu0 0
    %801 = vmatprep.subr.bf16.mxu0 0
    %802 = vmatpush1.bf16.msra.mxu0 0
    %803 = vmatprep.subr.bf16.mxu0 0
    %804 = vmatpush1.bf16.msra.mxu0 0
    %805 = vmatprep.subr.bf16.mxu0 0
    %806 = vmatpush1.bf16.msra.mxu0 0
    %807 = vmatprep.subr.bf16.mxu0 0
    %808 = vmatpush1.bf16.msra.mxu0 0
    %809 = vmatprep.subr.bf16.mxu0 0
    %810 = vmatpush1.bf16.msra.mxu0 0
    %811 = vmatprep.subr.bf16.mxu0 0
    %812 = vmatpush1.bf16.msra.mxu0 0
    %813 = vmatprep.subr.bf16.mxu0 0
    %814 = vmatpush1.bf16.msra.mxu0 0
    %815 = vmatprep.mubr.bf16.mxu0 0
    %816 = vmatmul.mubr.bf16.gmra.mrb[0].mxu0 %v778
    %v817 = vpop.f32.mrb[0].mxu0
    %v818 = vadd.f32 %v749, %v817
    %v819 = vpop.f32.mrb[0].mxu0
    %v820 = vpop.f32.mrb[0].mxu0
    %v821 = vadd.f32 %v754, %v820
    %v822 = vpop.f32.mrb[0].mxu0
    %823 = vmatprep.mubr.bf16.mxu0 0
    %824 = vmatmul.mubr.bf16.gmra.mrb[0].mxu0 %v781
    %v825 = vpop.f32.mrb[0].mxu0
    %v826 = vadd.f32 %v759, %v825
    %v827 = vpop.f32.mrb[0].mxu0
    %v828 = vpop.f32.mrb[0].mxu0
    %v829 = vadd.f32 %v764, %v828
    %v830 = vpop.f32.mrb[0].mxu0
    %831 = vdwg.mxu0
    %v832 = vmax.f32 %v818, 0.0
    %v833 = vmax.f32 %v821, 0.0
    %v834 = vmax.f32 %v826, 0.0
    %v835 = vmax.f32 %v829, 0.0
    %v836 = vld [vmem:[%s9] sm:$0x1]
    %v837 = vld [vmem:[%s10] sm:$0x1]
    %v839 = vsel %vm495, %v837, 0
    %841 = vmatprep.subr.mxu0 0.0
    %842 = vmatpush1.msra.mxu0 %v832
    %843 = vmatprep.subr.mxu0 0.0
    %844 = vmatpush1.msra.mxu0 %v833
    %845 = vmatprep.subr.mxu0 0.0
    %846 = vmatpush1.msra.mxu0 %v834
    %847 = vmatprep.subr.mxu0 0.0
    %848 = vmatpush1.msra.mxu0 %v835
    %849 = vmatprep.subr.mxu0 0.0
    %850 = vmatpush1.msra.mxu0 0.0
    %851 = vmatprep.subr.mxu0 0.0
    %852 = vmatpush1.msra.mxu0 0.0
    %853 = vmatprep.subr.mxu0 0.0
    %854 = vmatpush1.msra.mxu0 0.0
    %855 = vmatprep.subr.mxu0 0.0
    %856 = vmatpush1.msra.mxu0 0.0
    %857 = vmatprep.subr.mxu0 0.0
    %858 = vmatpush1.msra.mxu0 0.0
    %859 = vmatprep.subr.mxu0 0.0
    %860 = vmatpush1.msra.mxu0 0.0
    %861 = vmatprep.subr.mxu0 0.0
    %862 = vmatpush1.msra.mxu0 0.0
    %863 = vmatprep.subr.mxu0 0.0
    %864 = vmatpush1.msra.mxu0 0.0
    %865 = vmatprep.subr.mxu0 0.0
    %866 = vmatpush1.msra.mxu0 0.0
    %867 = vmatprep.subr.mxu0 0.0
    %868 = vmatpush1.msra.mxu0 0.0
    %869 = vmatprep.subr.mxu0 0.0
    %870 = vmatpush1.msra.mxu0 0.0
    %871 = vmatprep.subr.mxu0 0.0
    %872 = vmatpush1.msra.mxu0 0.0
    %873 = vmatprep.subr.mxu0 0.0
    %874 = vmatpush1.msra.mxu0 0.0
    %875 = vmatprep.subr.mxu0 0.0
    %876 = vmatpush1.msra.mxu0 0.0
    %877 = vmatprep.subr.mxu0 0.0
    %878 = vmatpush1.msra.mxu0 0.0
    %879 = vmatprep.subr.mxu0 0.0
    %880 = vmatpush1.msra.mxu0 0.0
    %881 = vmatprep.subr.mxu0 0.0
    %882 = vmatpush1.msra.mxu0 0.0
    %883 = vmatprep.subr.mxu0 0.0
    %884 = vmatpush1.msra.mxu0 0.0
    %885 = vmatprep.subr.mxu0 0.0
    %886 = vmatpush1.msra.mxu0 0.0
    %887 = vmatprep.subr.mxu0 0.0
    %888 = vmatpush1.msra.mxu0 0.0
    %889 = vmatprep.subr.mxu0 0.0
    %890 = vmatpush1.msra.mxu0 0.0
    %891 = vmatprep.subr.mxu0 0.0
    %892 = vmatpush1.msra.mxu0 0.0
    %893 = vmatprep.subr.mxu0 0.0
    %894 = vmatpush1.msra.mxu0 0.0
    %895 = vmatprep.subr.mxu0 0.0
    %896 = vmatpush1.msra.mxu0 0.0
    %897 = vmatprep.subr.mxu0 0.0
    %898 = vmatpush1.msra.mxu0 0.0
    %899 = vmatprep.subr.mxu0 0.0
    %900 = vmatpush1.msra.mxu0 0.0
    %901 = vmatprep.subr.mxu0 0.0
    %902 = vmatpush1.msra.mxu0 0.0
    %903 = vmatprep.subr.mxu0 0.0
    %904 = vmatpush1.msra.mxu0 0.0
    %905 = vmatprep.mubr.f32.mxu0 0.0
    %906 = vmatmul.mubr.f32.gmra.mrb[0].mxu0 %v839
    %v907 = vpop.f32.mrb[0].mxu0
    %v908 = vadd.f32 0.0, %v907
    %v909 = vpop.f32.mrb[0].mxu0
    %910 = vdwg.mxu0
    %v912 = vsel %vm495, %v836, 0
    %914 = vmatprep.subr.mxu0 0.0
    %915 = vmatpush1.msra.mxu0 %v451
    %916 = vmatprep.subr.mxu0 0.0
    %917 = vmatpush1.msra.mxu0 %v452
    %918 = vmatprep.subr.mxu0 0.0
    %919 = vmatpush1.msra.mxu0 %v453
    %920 = vmatprep.subr.mxu0 0.0
    %921 = vmatpush1.msra.mxu0 %v454
    %922 = vmatprep.subr.mxu0 0.0
    %923 = vmatpush1.msra.mxu0 0.0
    %924 = vmatprep.subr.mxu0 0.0
    %925 = vmatpush1.msra.mxu0 0.0
    %926 = vmatprep.subr.mxu0 0.0
    %927 = vmatpush1.msra.mxu0 0.0
    %928 = vmatprep.subr.mxu0 0.0
    %929 = vmatpush1.msra.mxu0 0.0
    %930 = vmatprep.subr.mxu0 0.0
    %931 = vmatpush1.msra.mxu0 0.0
    %932 = vmatprep.subr.mxu0 0.0
    %933 = vmatpush1.msra.mxu0 0.0
    %934 = vmatprep.subr.mxu0 0.0
    %935 = vmatpush1.msra.mxu0 0.0
    %936 = vmatprep.subr.mxu0 0.0
    %937 = vmatpush1.msra.mxu0 0.0
    %938 = vmatprep.subr.mxu0 0.0
    %939 = vmatpush1.msra.mxu0 0.0
    %940 = vmatprep.subr.mxu0 0.0
    %941 = vmatpush1.msra.mxu0 0.0
    %942 = vmatprep.subr.mxu0 0.0
    %943 = vmatpush1.msra.mxu0 0.0
    %944 = vmatprep.subr.mxu0 0.0
    %945 = vmatpush1.msra.mxu0 0.0
    %946 = vmatprep.subr.mxu0 0.0
    %947 = vmatpush1.msra.mxu0 0.0
    %948 = vmatprep.subr.mxu0 0.0
    %949 = vmatpush1.msra.mxu0 0.0
    %950 = vmatprep.subr.mxu0 0.0
    %951 = vmatpush1.msra.mxu0 0.0
    %952 = vmatprep.subr.mxu0 0.0
    %953 = vmatpush1.msra.mxu0 0.0
    %954 = vmatprep.subr.mxu0 0.0
    %955 = vmatpush1.msra.mxu0 0.0
    %956 = vmatprep.subr.mxu0 0.0
    %957 = vmatpush1.msra.mxu0 0.0
    %958 = vmatprep.subr.mxu0 0.0
    %959 = vmatpush1.msra.mxu0 0.0
    %960 = vmatprep.subr.mxu0 0.0
    %961 = vmatpush1.msra.mxu0 0.0
    %962 = vmatprep.subr.mxu0 0.0
    %963 = vmatpush1.msra.mxu0 0.0
    %964 = vmatprep.subr.mxu0 0.0
    %965 = vmatpush1.msra.mxu0 0.0
    %966 = vmatprep.subr.mxu0 0.0
    %967 = vmatpush1.msra.mxu0 0.0
    %968 = vmatprep.subr.mxu0 0.0
    %969 = vmatpush1.msra.mxu0 0.0
    %970 = vmatprep.subr.mxu0 0.0
    %971 = vmatpush1.msra.mxu0 0.0
    %972 = vmatprep.subr.mxu0 0.0
    %973 = vmatpush1.msra.mxu0 0.0
    %974 = vmatprep.subr.mxu0 0.0
    %975 = vmatpush1.msra.mxu0 0.0
    %976 = vmatprep.subr.mxu0 0.0
    %977 = vmatpush1.msra.mxu0 0.0
    %978 = vmatprep.mubr.f32.mxu0 0.0
    %979 = vmatmul.mubr.f32.gmra.mrb[0].mxu0 %v912
    %v980 = vpop.f32.mrb[0].mxu0
    %v981 = vadd.f32 %v908, %v980
    %v982 = vpop.f32.mrb[0].mxu0
    %983 = vdwg.mxu0
    %v984 = vld [vmem:[#allocation2] sm:$0x1]
    %986 = vset.pattern.permute.xlu0 0
    %987 = vperm.xlu0 %986, %v984
    %v988 = vpop.permute.xlu0 %987
    %v990 = vlaneseq
    %v991 = vshrl.u32 %v990, 7
    %v992 = vsub.s32 0, %v991
    %v993 = vrot.slane %v988, %v992
    %v994 = vadd.f32 %v981, %v993
    %v995 = vxor.u32 %v994, 2147483648
    %v996 = vmul.f32 %v995, 1.442695
    %v997 = vpow.pop %v996
    %v998 = vadd.f32 %v997, 1.0
    %v999 = vrcp.pop %v998
    %v1000 = vmul.f32 1.0, %v999
    %vm1001 = vcmask 57344
    %1002 = vst.msk [vmem:[#allocation3] sm:$0x1] %vm1001, %v1000
    // Predicated region
    $region50: #{tpu_custom_call.1} parent=1 // pred_check
      _
    $region51: #{tpu_custom_call.1} parent=1 // pred_check_branch
      %1004 = sbr.rel (0) target = $region53
    $region52: #{tpu_custom_call.1} parent=1 // pred_region
      %s1006 = ssub.s32 16, 16
      %1007 = vsyncadd [#allocation4], %s1006
      %s1009 = sshll.u32 [#allocation3], 4
      %s1010 = int_to_ptr.vmem [resolvable:$true] %s1009
      %1012 = dma.vmem_to_hbm [thread:$0]  %s1010, 16, %s12, [#allocation4]
    $region53: #{tpu_custom_call.1} parent=1 // pred_fallthru
      _
    // Predicated region
    $region54: #{tpu_custom_call.1} parent=1 // pred_check
      _
    $region55: #{tpu_custom_call.1} parent=1 // pred_check_branch
      %1014 = sbr.rel (0) target = $region57
    $region56: #{tpu_custom_call.1} parent=1 // pred_region
      %1015 = dma.done [#allocation4], 16
    $region57: #{tpu_custom_call.1} parent=1 // pred_fallthru
      _
    %1016 = vsyncpa [#allocation4], 1

// kernel: tpu_custom_call.1
$region0: #{tpu_custom_call.1}
  #allocation0 [shape = 'u32[]', space=smem, size = 0x4, offset = 0x4, fixed_abs, tag = 'smem constant byte address 0x4 - core index']
  #allocation1 [shape = 'u32[144,128]{1,0:T(1,128)}', space=vmem, size = 0x12000, scoped, tag = 'internal scratch']
  #allocation2 [shape = 'f32[1,1]{1,0:T(1,128)S(1)}', space=vmem, size = 0x200, scoped, tag = 'scoped memory for tpu_custom_call.1']
  %s0 = inlined_call_operand.vmem [shape: s32[1,8], index: 0, kind: input, shape index: {}]
  %s1 = inlined_call_operand.vmem [shape: s32[1,8], index: 1, kind: input, shape index: {}]
  %s2 = inlined_call_operand.vmem [shape: bf16[64,100], index: 2, kind: input, shape index: {}]
  %s3 = inlined_call_operand.vmem [shape: bf16[64,200], index: 3, kind: input, shape index: {}]
  %s4 = inlined_call_operand.vmem [shape: bf16[64,32], index: 4, kind: input, shape index: {}]
  %s5 = inlined_call_operand.vmem [shape: bf16[64,32], index: 5, kind: input, shape index: {}]
  %s6 = inlined_call_operand.vmem [shape: f32[64,1], index: 6, kind: input, shape index: {}]
  %s7 = inlined_call_operand.vmem [shape: bf16[32,64], index: 7, kind: input, shape index: {}]
  %s8 = inlined_call_operand.vmem [shape: f32[32,1], index: 8, kind: input, shape index: {}]
  %s9 = inlined_call_operand.vmem [shape: f32[1,32], index: 9, kind: input, shape index: {}]
  %s10 = inlined_call_operand.vmem [shape: f32[1,32], index: 10, kind: input, shape index: {}]
  %s11 = inlined_call_operand.<no memory space> [shape: f32[1,1], index: 11, kind: input, shape index: {}]
  %s12 = inlined_call_operand.hbm [shape: f32[1,8], index: 12, kind: output, shape index: {}]
  %s13 = sld [smem:[#allocation0]]
  $region58: #{tpu_custom_call.1} parent=0
    _
  %s15 = ssub.s32 1, %s13
  %s16 = scalar_select 0, %s15, %s13
  %v17 = vstv %s11
  %18 = vst [vmem:[#allocation2] sm:$0x1] %v17
  $region1: #{tpu_custom_call.1} parent=0
    #allocation3 [shape = 'u8[512]{0}', space=vmem, size = 0x400, scoped, tag = 'output window, operand 0, single buffered']
    #allocation4 [shape = 's32[1]{0}', space=sflag, size = 0x4, scoped, tag = 'scoped memory for tpu_custom_call.1']
    %19 = vsyncpa [#allocation4], 0
    // Predicated region
    $region2: #{tpu_custom_call.1} parent=1 // pred_check
      _
    $region3: #{tpu_custom_call.1} parent=1 // pred_check_branch
      %21 = sbr.rel (0) target = $region5
    $region4: #{tpu_custom_call.1} parent=1 // pred_region
      _
    $region5: #{tpu_custom_call.1} parent=1 // pred_fallthru
      _
    // Predicated region
    $region6: #{tpu_custom_call.1} parent=1 // pred_check
      _
    $region7: #{tpu_custom_call.1} parent=1 // pred_check_branch
      %23 = sbr.rel (0) target = $region9
    $region8: #{tpu_custom_call.1} parent=1 // pred_region
      _
    $region9: #{tpu_custom_call.1} parent=1 // pred_fallthru
      _
    // Predicated region
    $region10: #{tpu_custom_call.1} parent=1 // pred_check
      _
    $region11: #{tpu_custom_call.1} parent=1 // pred_check_branch
      %25 = sbr.rel (0) target = $region13
    $region12: #{tpu_custom_call.1} parent=1 // pred_region
      _
    $region13: #{tpu_custom_call.1} parent=1 // pred_fallthru
      _
    // Predicated region
    $region14: #{tpu_custom_call.1} parent=1 // pred_check
      _
    $region15: #{tpu_custom_call.1} parent=1 // pred_check_branch
      %27 = sbr.rel (0) target = $region17
    $region16: #{tpu_custom_call.1} parent=1 // pred_region
      _
    $region17: #{tpu_custom_call.1} parent=1 // pred_fallthru
      _
    // Predicated region
    $region18: #{tpu_custom_call.1} parent=1 // pred_check
      _
    $region19: #{tpu_custom_call.1} parent=1 // pred_check_branch
      %29 = sbr.rel (0) target = $region21
    $region20: #{tpu_custom_call.1} parent=1 // pred_region
      _
    $region21: #{tpu_custom_call.1} parent=1 // pred_fallthru
      _
    // Predicated region
    $region22: #{tpu_custom_call.1} parent=1 // pred_check
      _
    $region23: #{tpu_custom_call.1} parent=1 // pred_check_branch
      %31 = sbr.rel (0) target = $region25
    $region24: #{tpu_custom_call.1} parent=1 // pred_region
      _
    $region25: #{tpu_custom_call.1} parent=1 // pred_fallthru
      _
    // Predicated region
    $region26: #{tpu_custom_call.1} parent=1 // pred_check
      _
    $region27: #{tpu_custom_call.1} parent=1 // pred_check_branch
      %33 = sbr.rel (0) target = $region29
    $region28: #{tpu_custom_call.1} parent=1 // pred_region
      _
    $region29: #{tpu_custom_call.1} parent=1 // pred_fallthru
      _
    // Predicated region
    $region30: #{tpu_custom_call.1} parent=1 // pred_check
      _
    $region31: #{tpu_custom_call.1} parent=1 // pred_check_branch
      %35 = sbr.rel (0) target = $region33
    $region32: #{tpu_custom_call.1} parent=1 // pred_region
      _
    $region33: #{tpu_custom_call.1} parent=1 // pred_fallthru
      _
    // Predicated region
    $region34: #{tpu_custom_call.1} parent=1 // pred_check
      _
    $region35: #{tpu_custom_call.1} parent=1 // pred_check_branch
      %37 = sbr.rel (0) target = $region37
    $region36: #{tpu_custom_call.1} parent=1 // pred_region
      _
    $region37: #{tpu_custom_call.1} parent=1 // pred_fallthru
      _
    // Predicated region
    $region38: #{tpu_custom_call.1} parent=1 // pred_check
      _
    $region39: #{tpu_custom_call.1} parent=1 // pred_check_branch
      %39 = sbr.rel (0) target = $region41
    $region40: #{tpu_custom_call.1} parent=1 // pred_region
      _
    $region41: #{tpu_custom_call.1} parent=1 // pred_fallthru
      _
    // Predicated region
    $region42: #{tpu_custom_call.1} parent=1 // pred_check
      _
    $region43: #{tpu_custom_call.1} parent=1 // pred_check_branch
      %41 = sbr.rel (0) target = $region45
    $region44: #{tpu_custom_call.1} parent=1 // pred_region
      _
    $region45: #{tpu_custom_call.1} parent=1 // pred_fallthru
      _
    // Predicated region
    $region46: #{tpu_custom_call.1} parent=1 // pred_check
      _
    $region47: #{tpu_custom_call.1} parent=1 // pred_check_branch
      %43 = sbr.rel (0) target = $region49
    $region48: #{tpu_custom_call.1} parent=1 // pred_region
      _
    $region49: #{tpu_custom_call.1} parent=1 // pred_fallthru
      _
    %v45 = vld [vmem:[%s0] sm:$0x1]
    %v46 = vld [vmem:[%s1] sm:$0x1]
    %v47 = vlaneseq
    %v48 = vshrl.u32 %v47, 7
    %v49 = vadd.s32 %v48, 8
    %v50 = vadd.s32 %v48, 16
    %v51 = vadd.s32 %v48, 24
    %v52 = vadd.s32 %v48, 32
    %v53 = vadd.s32 %v48, 40
    %v54 = vadd.s32 %v48, 48
    %v55 = vadd.s32 %v48, 56
    %v56 = vadd.s32 %v48, 64
    %v57 = vadd.s32 %v48, 72
    %v58 = vadd.s32 %v48, 80
    %v59 = vadd.s32 %v48, 88
    %v60 = vadd.s32 %v48, 96
    %v61 = vlaneseq
    %v62 = vshrl.u32 %v61, 7
    %v63 = vsub.s32 0, %v62
    %v64 = vrot.slane %v45, %v63
    %vm65 = vcmp.eq.s32.totalorder %v48, %v64
    %vm66 = vcmp.eq.s32.totalorder %v49, %v64
    %vm67 = vcmp.eq.s32.totalorder %v50, %v64
    %vm68 = vcmp.eq.s32.totalorder %v51, %v64
    %vm69 = vcmp.eq.s32.totalorder %v52, %v64
    %vm70 = vcmp.eq.s32.totalorder %v53, %v64
    %vm71 = vcmp.eq.s32.totalorder %v54, %v64
    %vm72 = vcmp.eq.s32.totalorder %v55, %v64
    %vm73 = vcmp.eq.s32.totalorder %v56, %v64
    %vm74 = vcmp.eq.s32.totalorder %v57, %v64
    %vm75 = vcmp.eq.s32.totalorder %v58, %v64
    %vm76 = vcmp.eq.s32.totalorder %v59, %v64
    %vm77 = vcmp.eq.s32.totalorder %v60, %v64
    %v78 = vsel %vm65, 1, 0
    %v79 = vsel %vm66, 1, 0
    %v80 = vsel %vm67, 1, 0
    %v81 = vsel %vm68, 1, 0
    %v82 = vsel %vm69, 1, 0
    %v83 = vsel %vm70, 1, 0
    %v84 = vsel %vm71, 1, 0
    %v85 = vsel %vm72, 1, 0
    %v86 = vsel %vm73, 1, 0
    %v87 = vsel %vm74, 1, 0
    %v88 = vsel %vm75, 1, 0
    %v89 = vsel %vm76, 1, 0
    %v90 = vsel %vm77, 1, 0
    %v91 = vcvt.s32.f32 %v78
    %v92 = vcvt.s32.f32 %v79
    %v93 = vcvt.s32.f32 %v80
    %v94 = vcvt.s32.f32 %v81
    %v95 = vcvt.s32.f32 %v82
    %v96 = vcvt.s32.f32 %v83
    %v97 = vcvt.s32.f32 %v84
    %v98 = vcvt.s32.f32 %v85
    %v99 = vcvt.s32.f32 %v86
    %v100 = vcvt.s32.f32 %v87
    %v101 = vcvt.s32.f32 %v88
    %v102 = vcvt.s32.f32 %v89
    %v103 = vcvt.s32.f32 %v90
    %v104 = vpack.c.bf16 %v92, %v91
    %v105 = vpack.c.bf16 %v94, %v93
    %v106 = vpack.c.bf16 %v96, %v95
    %v107 = vpack.c.bf16 %v98, %v97
    %v108 = vpack.c.bf16 %v100, %v99
    %v109 = vpack.c.bf16 %v102, %v101
    %v110 = vpack.c.bf16 %v103, %v103
    %v111 = vadd.s32 %v48, 104
    %v112 = vadd.s32 %v48, 112
    %v113 = vadd.s32 %v48, 120
    %v114 = vadd.s32 %v48, 128
    %v115 = vadd.s32 %v48, 136
    %v116 = vadd.s32 %v48, 144
    %v117 = vadd.s32 %v48, 152
    %v118 = vadd.s32 %v48, 160
    %v119 = vadd.s32 %v48, 168
    %v120 = vadd.s32 %v48, 176
    %v121 = vadd.s32 %v48, 184
    %v122 = vadd.s32 %v48, 192
    %v123 = vlaneseq
    %v124 = vshrl.u32 %v123, 7
    %v125 = vsub.s32 0, %v124
    %v126 = vrot.slane %v46, %v125
    %vm127 = vcmp.eq.s32.totalorder %v48, %v126
    %vm128 = vcmp.eq.s32.totalorder %v49, %v126
    %vm129 = vcmp.eq.s32.totalorder %v50, %v126
    %vm130 = vcmp.eq.s32.totalorder %v51, %v126
    %vm131 = vcmp.eq.s32.totalorder %v52, %v126
    %vm132 = vcmp.eq.s32.totalorder %v53, %v126
    %vm133 = vcmp.eq.s32.totalorder %v54, %v126
    %vm134 = vcmp.eq.s32.totalorder %v55, %v126
    %vm135 = vcmp.eq.s32.totalorder %v56, %v126
    %vm136 = vcmp.eq.s32.totalorder %v57, %v126
    %vm137 = vcmp.eq.s32.totalorder %v58, %v126
    %vm138 = vcmp.eq.s32.totalorder %v59, %v126
    %vm139 = vcmp.eq.s32.totalorder %v60, %v126
    %vm140 = vcmp.eq.s32.totalorder %v111, %v126
    %vm141 = vcmp.eq.s32.totalorder %v112, %v126
    %vm142 = vcmp.eq.s32.totalorder %v113, %v126
    %vm143 = vcmp.eq.s32.totalorder %v114, %v126
    %vm144 = vcmp.eq.s32.totalorder %v115, %v126
    %vm145 = vcmp.eq.s32.totalorder %v116, %v126
    %vm146 = vcmp.eq.s32.totalorder %v117, %v126
    %vm147 = vcmp.eq.s32.totalorder %v118, %v126
    %vm148 = vcmp.eq.s32.totalorder %v119, %v126
    %vm149 = vcmp.eq.s32.totalorder %v120, %v126
    %vm150 = vcmp.eq.s32.totalorder %v121, %v126
    %vm151 = vcmp.eq.s32.totalorder %v122, %v126
    %v152 = vsel %vm127, 1, 0
    %v153 = vsel %vm128, 1, 0
    %v154 = vsel %vm129, 1, 0
    %v155 = vsel %vm130, 1, 0
    %v156 = vsel %vm131, 1, 0
    %v157 = vsel %vm132, 1, 0
    %v158 = vsel %vm133, 1, 0
    %v159 = vsel %vm134, 1, 0
    %v160 = vsel %vm135, 1, 0
    %v161 = vsel %vm136, 1, 0
    %v162 = vsel %vm137, 1, 0
    %v163 = vsel %vm138, 1, 0
    %v164 = vsel %vm139, 1, 0
    %v165 = vsel %vm140, 1, 0
    %v166 = vsel %vm141, 1, 0
    %v167 = vsel %vm142, 1, 0
    %v168 = vsel %vm143, 1, 0
    %v169 = vsel %vm144, 1, 0
    %v170 = vsel %vm145, 1, 0
    %v171 = vsel %vm146, 1, 0
    %v172 = vsel %vm147, 1, 0
    %v173 = vsel %vm148, 1, 0
    %v174 = vsel %vm149, 1, 0
    %v175 = vsel %vm150, 1, 0
    %v176 = vsel %vm151, 1, 0
    %v177 = vcvt.s32.f32 %v152
    %v178 = vcvt.s32.f32 %v153
    %v179 = vcvt.s32.f32 %v154
    %v180 = vcvt.s32.f32 %v155
    %v181 = vcvt.s32.f32 %v156
    %v182 = vcvt.s32.f32 %v157
    %v183 = vcvt.s32.f32 %v158
    %v184 = vcvt.s32.f32 %v159
    %v185 = vcvt.s32.f32 %v160
    %v186 = vcvt.s32.f32 %v161
    %v187 = vcvt.s32.f32 %v162
    %v188 = vcvt.s32.f32 %v163
    %v189 = vcvt.s32.f32 %v164
    %v190 = vcvt.s32.f32 %v165
    %v191 = vcvt.s32.f32 %v166
    %v192 = vcvt.s32.f32 %v167
    %v193 = vcvt.s32.f32 %v168
    %v194 = vcvt.s32.f32 %v169
    %v195 = vcvt.s32.f32 %v170
    %v196 = vcvt.s32.f32 %v171
    %v197 = vcvt.s32.f32 %v172
    %v198 = vcvt.s32.f32 %v173
    %v199 = vcvt.s32.f32 %v174
    %v200 = vcvt.s32.f32 %v175
    %v201 = vcvt.s32.f32 %v176
    %v202 = vpack.c.bf16 %v178, %v177
    %v203 = vpack.c.bf16 %v180, %v179
    %v204 = vpack.c.bf16 %v182, %v181
    %v205 = vpack.c.bf16 %v184, %v183
    %v206 = vpack.c.bf16 %v186, %v185
    %v207 = vpack.c.bf16 %v188, %v187
    %v208 = vpack.c.bf16 %v190, %v189
    %v209 = vpack.c.bf16 %v192, %v191
    %v210 = vpack.c.bf16 %v194, %v193
    %v211 = vpack.c.bf16 %v196, %v195
    %v212 = vpack.c.bf16 %v198, %v197
    %v213 = vpack.c.bf16 %v200, %v199
    %v214 = vpack.c.bf16 %v201, %v201
    %v215 = vld [vmem:[%s2] sm:$0xf]
    %v216 = vld [vmem:[%s2 + $0x4] sm:$0xf]
    %v217 = vld [vmem:[%s2 + $0x8] sm:$0xf]
    %v218 = vld [vmem:[%s2 + $0xc] sm:$0xf]
    %v219 = vld [vmem:[%s2 + $0x10] sm:$0xf]
    %v220 = vld [vmem:[%s2 + $0x14] sm:$0xf]
    %v221 = vld [vmem:[%s2 + $0x18] sm:$0xf]
    %v222 = vld [vmem:[%s2 + $0x1c] sm:$0xf]
    %v231 = vunpack.c.l.b16 %v215
    %v232 = vunpack.c.l.b16 %v216
    %v233 = vunpack.c.l.b16 %v217
    %v234 = vunpack.c.l.b16 %v218
    %v235 = vunpack.c.l.b16 %v219
    %v236 = vunpack.c.l.b16 %v220
    %v237 = vunpack.c.l.b16 %v221
    %v238 = vunpack.c.l.b16 %v222
    %v239 = vpack.c.b16 %v232, %v231
    %v240 = vpack.c.b16 %v234, %v233
    %v241 = vpack.c.b16 %v236, %v235
    %v242 = vpack.c.b16 %v238, %v237
    %vm243 = vcmask 818176
    %v245 = vsel %vm243, %v239, 0
    %v248 = vsel %vm243, %v240, 0
    %v251 = vsel %vm243, %v241, 0
    %v254 = vsel %vm243, %v242, 0
    %vm256 = vcmask 1041408
    %v258 = vsel %vm256, %v110, 0
    %260 = vmatprep.subr.bf16.mxu0 0
    %261 = vmatpush1.bf16.msra.mxu0 %v104
    %262 = vmatprep.subr.bf16.mxu0 0
    %263 = vmatpush1.bf16.msra.mxu0 %v105
    %264 = vmatprep.subr.bf16.mxu0 0
    %265 = vmatpush1.bf16.msra.mxu0 %v106
    %266 = vmatprep.subr.bf16.mxu0 0
    %267 = vmatpush1.bf16.msra.mxu0 %v107
    %268 = vmatprep.subr.bf16.mxu0 0
    %269 = vmatpush1.bf16.msra.mxu0 %v108
    %270 = vmatprep.subr.bf16.mxu0 0
    %271 = vmatpush1.bf16.msra.mxu0 %v109
    %272 = vmatprep.subr.bf16.mxu0 0
    %273 = vmatpush1.bf16.msra.mxu0 %v258
    %274 = vmatprep.subr.bf16.mxu0 0
    %275 = vmatpush1.bf16.msra.mxu0 0
    %276 = vmatprep.subr.bf16.mxu0 0
    %277 = vmatpush1.bf16.msra.mxu0 0
    %278 = vmatprep.subr.bf16.mxu0 0
    %279 = vmatpush1.bf16.msra.mxu0 0
    %280 = vmatprep.subr.bf16.mxu0 0
    %281 = vmatpush1.bf16.msra.mxu0 0
    %282 = vmatprep.subr.bf16.mxu0 0
    %283 = vmatpush1.bf16.msra.mxu0 0
    %284 = vmatprep.subr.bf16.mxu0 0
    %285 = vmatpush1.bf16.msra.mxu0 0
    %286 = vmatprep.subr.bf16.mxu0 0
    %287 = vmatpush1.bf16.msra.mxu0 0
    %288 = vmatprep.subr.bf16.mxu0 0
    %289 = vmatpush1.bf16.msra.mxu0 0
    %290 = vmatprep.subr.bf16.mxu0 0
    %291 = vmatpush1.bf16.msra.mxu0 0
    %292 = vmatprep.mubr.bf16.mxu0 0
    %293 = vmatmul.mubr.bf16.gmra.mrb[0].mxu0 %v245
    %v294 = vpop.f32.mrb[0].mxu0
    %v295 = vadd.f32 0.0, %v294
    %v296 = vpop.f32.mrb[0].mxu0
    %v297 = vpop.f32.mrb[0].mxu0
    %v298 = vadd.f32 0.0, %v297
    %v299 = vpop.f32.mrb[0].mxu0
    %300 = vmatprep.mubr.bf16.mxu0 0
    %301 = vmatmul.mubr.bf16.gmra.mrb[0].mxu0 %v248
    %v302 = vpop.f32.mrb[0].mxu0
    %v303 = vadd.f32 0.0, %v302
    %v304 = vpop.f32.mrb[0].mxu0
    %v305 = vpop.f32.mrb[0].mxu0
    %v306 = vadd.f32 0.0, %v305
    %v307 = vpop.f32.mrb[0].mxu0
    %308 = vmatprep.mubr.bf16.mxu0 0
    %309 = vmatmul.mubr.bf16.gmra.mrb[0].mxu0 %v251
    %v310 = vpop.f32.mrb[0].mxu0
    %v311 = vadd.f32 0.0, %v310
    %v312 = vpop.f32.mrb[0].mxu0
    %v313 = vpop.f32.mrb[0].mxu0
    %v314 = vadd.f32 0.0, %v313
    %v315 = vpop.f32.mrb[0].mxu0
    %316 = vmatprep.mubr.bf16.mxu0 0
    %317 = vmatmul.mubr.bf16.gmra.mrb[0].mxu0 %v254
    %v318 = vpop.f32.mrb[0].mxu0
    %v319 = vadd.f32 0.0, %v318
    %v320 = vpop.f32.mrb[0].mxu0
    %v321 = vpop.f32.mrb[0].mxu0
    %v322 = vadd.f32 0.0, %v321
    %v323 = vpop.f32.mrb[0].mxu0
    %324 = vdwg.mxu0
    %v325 = vld [vmem:[%s3] sm:$0xff]
    %v326 = vld [vmem:[%s3 + $0x8] sm:$0xff]
    %v327 = vld [vmem:[%s3 + $0x10] sm:$0xff]
    %v328 = vld [vmem:[%s3 + $0x18] sm:$0xff]
    %v329 = vld [vmem:[%s3 + $0x20] sm:$0xff]
    %v330 = vld [vmem:[%s3 + $0x28] sm:$0xff]
    %v331 = vld [vmem:[%s3 + $0x30] sm:$0xff]
    %v332 = vld [vmem:[%s3 + $0x38] sm:$0xff]
    %v341 = vunpack.c.l.b16 %v325
    %v342 = vunpack.c.h.b16 %v325
    %v343 = vunpack.c.l.b16 %v326
    %v344 = vunpack.c.h.b16 %v326
    %v345 = vunpack.c.l.b16 %v327
    %v346 = vunpack.c.h.b16 %v327
    %v347 = vunpack.c.l.b16 %v328
    %v348 = vunpack.c.h.b16 %v328
    %v349 = vunpack.c.l.b16 %v329
    %v350 = vunpack.c.h.b16 %v329
    %v351 = vunpack.c.l.b16 %v330
    %v352 = vunpack.c.h.b16 %v330
    %v353 = vunpack.c.l.b16 %v331
    %v354 = vunpack.c.h.b16 %v331
    %v355 = vunpack.c.l.b16 %v332
    %v356 = vunpack.c.h.b16 %v332
    %v357 = vpack.c.b16 %v343, %v341
    %v358 = vpack.c.b16 %v344, %v342
    %v359 = vpack.c.b16 %v347, %v345
    %v360 = vpack.c.b16 %v348, %v346
    %v361 = vpack.c.b16 %v351, %v349
    %v362 = vpack.c.b16 %v352, %v350
    %v363 = vpack.c.b16 %v355, %v353
    %v364 = vpack.c.b16 %v356, %v354
    %vm369 = vcmask 588800
    %v371 = vsel %vm369, %v358, 0
    %v374 = vsel %vm369, %v360, 0
    %v377 = vsel %vm369, %v362, 0
    %v380 = vsel %vm369, %v364, 0
    %vm382 = vcmask 1043456
    %v384 = vsel %vm382, %v214, 0
    %386 = vmatprep.subr.bf16.mxu0 0
    %387 = vmatpush1.bf16.msra.mxu0 %v202
    %388 = vmatprep.subr.bf16.mxu0 0
    %389 = vmatpush1.bf16.msra.mxu0 %v203
    %390 = vmatprep.subr.bf16.mxu0 0
    %391 = vmatpush1.bf16.msra.mxu0 %v204
    %392 = vmatprep.subr.bf16.mxu0 0
    %393 = vmatpush1.bf16.msra.mxu0 %v205
    %394 = vmatprep.subr.bf16.mxu0 0
    %395 = vmatpush1.bf16.msra.mxu0 %v206
    %396 = vmatprep.subr.bf16.mxu0 0
    %397 = vmatpush1.bf16.msra.mxu0 %v207
    %398 = vmatprep.subr.bf16.mxu0 0
    %399 = vmatpush1.bf16.msra.mxu0 %v208
    %400 = vmatprep.subr.bf16.mxu0 0
    %401 = vmatpush1.bf16.msra.mxu0 %v209
    %402 = vmatprep.subr.bf16.mxu0 0
    %403 = vmatpush1.bf16.msra.mxu0 %v210
    %404 = vmatprep.subr.bf16.mxu0 0
    %405 = vmatpush1.bf16.msra.mxu0 %v211
    %406 = vmatprep.subr.bf16.mxu0 0
    %407 = vmatpush1.bf16.msra.mxu0 %v212
    %408 = vmatprep.subr.bf16.mxu0 0
    %409 = vmatpush1.bf16.msra.mxu0 %v213
    %410 = vmatprep.subr.bf16.mxu0 0
    %411 = vmatpush1.bf16.msra.mxu0 %v384
    %412 = vmatprep.subr.bf16.mxu0 0
    %413 = vmatpush1.bf16.msra.mxu0 0
    %414 = vmatprep.subr.bf16.mxu0 0
    %415 = vmatpush1.bf16.msra.mxu0 0
    %416 = vmatprep.subr.bf16.mxu0 0
    %417 = vmatpush1.bf16.msra.mxu0 0
    %418 = vmatprep.mubr.bf16.mxu0 %v371
    %419 = vmatmul.mubr.bf16.gmra.mrb[0].mxu0 %v357
    %v420 = vpop.f32.mrb[0].mxu0
    %v421 = vadd.f32 0.0, %v420
    %v422 = vpop.f32.mrb[0].mxu0
    %v423 = vpop.f32.mrb[0].mxu0
    %v424 = vadd.f32 0.0, %v423
    %v425 = vpop.f32.mrb[0].mxu0
    %426 = vmatprep.mubr.bf16.mxu0 %v374
    %427 = vmatmul.mubr.bf16.gmra.mrb[0].mxu0 %v359
    %v428 = vpop.f32.mrb[0].mxu0
    %v429 = vadd.f32 0.0, %v428
    %v430 = vpop.f32.mrb[0].mxu0
    %v431 = vpop.f32.mrb[0].mxu0
    %v432 = vadd.f32 0.0, %v431
    %v433 = vpop.f32.mrb[0].mxu0
    %434 = vmatprep.mubr.bf16.mxu0 %v377
    %435 = vmatmul.mubr.bf16.gmra.mrb[0].mxu0 %v361
    %v436 = vpop.f32.mrb[0].mxu0
    %v437 = vadd.f32 0.0, %v436
    %v438 = vpop.f32.mrb[0].mxu0
    %v439 = vpop.f32.mrb[0].mxu0
    %v440 = vadd.f32 0.0, %v439
    %v441 = vpop.f32.mrb[0].mxu0
    %442 = vmatprep.mubr.bf16.mxu0 %v380
    %443 = vmatmul.mubr.bf16.gmra.mrb[0].mxu0 %v363
    %v444 = vpop.f32.mrb[0].mxu0
    %v445 = vadd.f32 0.0, %v444
    %v446 = vpop.f32.mrb[0].mxu0
    %v447 = vpop.f32.mrb[0].mxu0
    %v448 = vadd.f32 0.0, %v447
    %v449 = vpop.f32.mrb[0].mxu0
    %450 = vdwg.mxu0
    %v451 = vmul.f32 %v295, %v421
    %v452 = vmul.f32 %v298, %v424
    %v453 = vmul.f32 %v303, %v429
    %v454 = vmul.f32 %v306, %v432
    %v455 = vld [vmem:[%s4] sm:$0xf]
    %v456 = vld [vmem:[%s4 + $0x4] sm:$0xf]
    %v457 = vld [vmem:[%s4 + $0x8] sm:$0xf]
    %v458 = vld [vmem:[%s4 + $0xc] sm:$0xf]
    %v459 = vld [vmem:[%s4 + $0x10] sm:$0xf]
    %v460 = vld [vmem:[%s4 + $0x14] sm:$0xf]
    %v461 = vld [vmem:[%s4 + $0x18] sm:$0xf]
    %v462 = vld [vmem:[%s4 + $0x1c] sm:$0xf]
    %v463 = vpack.c.bf16 %v314, %v311
    %v464 = vpack.c.bf16 %v322, %v319
    %v465 = vld [vmem:[%s5] sm:$0xf]
    %v466 = vld [vmem:[%s5 + $0x4] sm:$0xf]
    %v467 = vld [vmem:[%s5 + $0x8] sm:$0xf]
    %v468 = vld [vmem:[%s5 + $0xc] sm:$0xf]
    %v469 = vld [vmem:[%s5 + $0x10] sm:$0xf]
    %v470 = vld [vmem:[%s5 + $0x14] sm:$0xf]
    %v471 = vld [vmem:[%s5 + $0x18] sm:$0xf]
    %v472 = vld [vmem:[%s5 + $0x1c] sm:$0xf]
    %v473 = vpack.c.bf16 %v440, %v437
    %v474 = vpack.c.bf16 %v448, %v445
    %v483 = vunpack.c.l.b16 %v465
    %v484 = vunpack.c.l.b16 %v466
    %v485 = vunpack.c.l.b16 %v467
    %v486 = vunpack.c.l.b16 %v468
    %v487 = vunpack.c.l.b16 %v469
    %v488 = vunpack.c.l.b16 %v470
    %v489 = vunpack.c.l.b16 %v471
    %v490 = vunpack.c.l.b16 %v472
    %v491 = vpack.c.b16 %v484, %v483
    %v492 = vpack.c.b16 %v486, %v485
    %v493 = vpack.c.b16 %v488, %v487
    %v494 = vpack.c.b16 %v490, %v489
    %vm495 = vcmask 261120
    %v497 = vsel %vm495, %v491, 0
    %v500 = vsel %vm495, %v492, 0
    %v503 = vsel %vm495, %v493, 0
    %v506 = vsel %vm495, %v494, 0
    %508 = vmatprep.subr.bf16.mxu0 0
    %509 = vmatpush1.bf16.msra.mxu0 %v473
    %510 = vmatprep.subr.bf16.mxu0 0
    %511 = vmatpush1.bf16.msra.mxu0 %v474
    %512 = vmatprep.subr.bf16.mxu0 0
    %513 = vmatpush1.bf16.msra.mxu0 0
    %514 = vmatprep.subr.bf16.mxu0 0
    %515 = vmatpush1.bf16.msra.mxu0 0
    %516 = vmatprep.subr.bf16.mxu0 0
    %517 = vmatpush1.bf16.msra.mxu0 0
    %518 = vmatprep.subr.bf16.mxu0 0
    %519 = vmatpush1.bf16.msra.mxu0 0
    %520 = vmatprep.subr.bf16.mxu0 0
    %521 = vmatpush1.bf16.msra.mxu0 0
    %522 = vmatprep.subr.bf16.mxu0 0
    %523 = vmatpush1.bf16.msra.mxu0 0
    %524 = vmatprep.subr.bf16.mxu0 0
    %525 = vmatpush1.bf16.msra.mxu0 0
    %526 = vmatprep.subr.bf16.mxu0 0
    %527 = vmatpush1.bf16.msra.mxu0 0
    %528 = vmatprep.subr.bf16.mxu0 0
    %529 = vmatpush1.bf16.msra.mxu0 0
    %530 = vmatprep.subr.bf16.mxu0 0
    %531 = vmatpush1.bf16.msra.mxu0 0
    %532 = vmatprep.subr.bf16.mxu0 0
    %533 = vmatpush1.bf16.msra.mxu0 0
    %534 = vmatprep.subr.bf16.mxu0 0
    %535 = vmatpush1.bf16.msra.mxu0 0
    %536 = vmatprep.subr.bf16.mxu0 0
    %537 = vmatpush1.bf16.msra.mxu0 0
    %538 = vmatprep.subr.bf16.mxu0 0
    %539 = vmatpush1.bf16.msra.mxu0 0
    %540 = vmatprep.mubr.bf16.mxu0 0
    %541 = vmatmul.mubr.bf16.gmra.mrb[0].mxu0 %v497
    %v542 = vpop.f32.mrb[0].mxu0
    %v543 = vadd.f32 0.0, %v542
    %v544 = vpop.f32.mrb[0].mxu0
    %v545 = vpop.f32.mrb[0].mxu0
    %v546 = vadd.f32 0.0, %v545
    %v547 = vpop.f32.mrb[0].mxu0
    %548 = vmatprep.mubr.bf16.mxu0 0
    %549 = vmatmul.mubr.bf16.gmra.mrb[0].mxu0 %v500
    %v550 = vpop.f32.mrb[0].mxu0
    %v551 = vadd.f32 0.0, %v550
    %v552 = vpop.f32.mrb[0].mxu0
    %v553 = vpop.f32.mrb[0].mxu0
    %v554 = vadd.f32 0.0, %v553
    %v555 = vpop.f32.mrb[0].mxu0
    %556 = vmatprep.mubr.bf16.mxu0 0
    %557 = vmatmul.mubr.bf16.gmra.mrb[0].mxu0 %v503
    %v558 = vpop.f32.mrb[0].mxu0
    %v559 = vadd.f32 0.0, %v558
    %v560 = vpop.f32.mrb[0].mxu0
    %v561 = vpop.f32.mrb[0].mxu0
    %v562 = vadd.f32 0.0, %v561
    %v563 = vpop.f32.mrb[0].mxu0
    %564 = vmatprep.mubr.bf16.mxu0 0
    %565 = vmatmul.mubr.bf16.gmra.mrb[0].mxu0 %v506
    %v566 = vpop.f32.mrb[0].mxu0
    %v567 = vadd.f32 0.0, %v566
    %v568 = vpop.f32.mrb[0].mxu0
    %v569 = vpop.f32.mrb[0].mxu0
    %v570 = vadd.f32 0.0, %v569
    %v571 = vpop.f32.mrb[0].mxu0
    %572 = vdwg.mxu0
    %v581 = vunpack.c.l.b16 %v455
    %v582 = vunpack.c.l.b16 %v456
    %v583 = vunpack.c.l.b16 %v457
    %v584 = vunpack.c.l.b16 %v458
    %v585 = vunpack.c.l.b16 %v459
    %v586 = vunpack.c.l.b16 %v460
    %v587 = vunpack.c.l.b16 %v461
    %v588 = vunpack.c.l.b16 %v462
    %v589 = vpack.c.b16 %v582, %v581
    %v590 = vpack.c.b16 %v584, %v583
    %v591 = vpack.c.b16 %v586, %v585
    %v592 = vpack.c.b16 %v588, %v587
    %v594 = vsel %vm495, %v589, 0
    %v597 = vsel %vm495, %v590, 0
    %v600 = vsel %vm495, %v591, 0
    %v603 = vsel %vm495, %v592, 0
    %605 = vmatprep.subr.bf16.mxu0 0
    %606 = vmatpush1.bf16.msra.mxu0 %v463
    %607 = vmatprep.subr.bf16.mxu0 0
    %608 = vmatpush1.bf16.msra.mxu0 %v464
    %609 = vmatprep.subr.bf16.mxu0 0
    %610 = vmatpush1.bf16.msra.mxu0 0
    %611 = vmatprep.subr.bf16.mxu0 0
    %612 = vmatpush1.bf16.msra.mxu0 0
    %613 = vmatprep.subr.bf16.mxu0 0
    %614 = vmatpush1.bf16.msra.mxu0 0
    %615 = vmatprep.subr.bf16.mxu0 0
    %616 = vmatpush1.bf16.msra.mxu0 0
    %617 = vmatprep.subr.bf16.mxu0 0
    %618 = vmatpush1.bf16.msra.mxu0 0
    %619 = vmatprep.subr.bf16.mxu0 0
    %620 = vmatpush1.bf16.msra.mxu0 0
    %621 = vmatprep.subr.bf16.mxu0 0
    %622 = vmatpush1.bf16.msra.mxu0 0
    %623 = vmatprep.subr.bf16.mxu0 0
    %624 = vmatpush1.bf16.msra.mxu0 0
    %625 = vmatprep.subr.bf16.mxu0 0
    %626 = vmatpush1.bf16.msra.mxu0 0
    %627 = vmatprep.subr.bf16.mxu0 0
    %628 = vmatpush1.bf16.msra.mxu0 0
    %629 = vmatprep.subr.bf16.mxu0 0
    %630 = vmatpush1.bf16.msra.mxu0 0
    %631 = vmatprep.subr.bf16.mxu0 0
    %632 = vmatpush1.bf16.msra.mxu0 0
    %633 = vmatprep.subr.bf16.mxu0 0
    %634 = vmatpush1.bf16.msra.mxu0 0
    %635 = vmatprep.subr.bf16.mxu0 0
    %636 = vmatpush1.bf16.msra.mxu0 0
    %637 = vmatprep.mubr.bf16.mxu0 0
    %638 = vmatmul.mubr.bf16.gmra.mrb[0].mxu0 %v594
    %v639 = vpop.f32.mrb[0].mxu0
    %v640 = vadd.f32 %v543, %v639
    %v641 = vpop.f32.mrb[0].mxu0
    %v642 = vpop.f32.mrb[0].mxu0
    %v643 = vadd.f32 %v546, %v642
    %v644 = vpop.f32.mrb[0].mxu0
    %645 = vmatprep.mubr.bf16.mxu0 0
    %646 = vmatmul.mubr.bf16.gmra.mrb[0].mxu0 %v597
    %v647 = vpop.f32.mrb[0].mxu0
    %v648 = vadd.f32 %v551, %v647
    %v649 = vpop.f32.mrb[0].mxu0
    %v650 = vpop.f32.mrb[0].mxu0
    %v651 = vadd.f32 %v554, %v650
    %v652 = vpop.f32.mrb[0].mxu0
    %653 = vmatprep.mubr.bf16.mxu0 0
    %654 = vmatmul.mubr.bf16.gmra.mrb[0].mxu0 %v600
    %v655 = vpop.f32.mrb[0].mxu0
    %v656 = vadd.f32 %v559, %v655
    %v657 = vpop.f32.mrb[0].mxu0
    %v658 = vpop.f32.mrb[0].mxu0
    %v659 = vadd.f32 %v562, %v658
    %v660 = vpop.f32.mrb[0].mxu0
    %661 = vmatprep.mubr.bf16.mxu0 0
    %662 = vmatmul.mubr.bf16.gmra.mrb[0].mxu0 %v603
    %v663 = vpop.f32.mrb[0].mxu0
    %v664 = vadd.f32 %v567, %v663
    %v665 = vpop.f32.mrb[0].mxu0
    %v666 = vpop.f32.mrb[0].mxu0
    %v667 = vadd.f32 %v570, %v666
    %v668 = vpop.f32.mrb[0].mxu0
    %669 = vdwg.mxu0
    %v670 = vld [vmem:[%s6] sm:$0xff]
    %v671 = vld [vmem:[%s6 + $0x8] sm:$0xff]
    %v672 = vld [vmem:[%s6 + $0x10] sm:$0xff]
    %v673 = vld [vmem:[%s6 + $0x18] sm:$0xff]
    %v674 = vld [vmem:[%s6 + $0x20] sm:$0xff]
    %v675 = vld [vmem:[%s6 + $0x28] sm:$0xff]
    %v676 = vld [vmem:[%s6 + $0x30] sm:$0xff]
    %v677 = vld [vmem:[%s6 + $0x38] sm:$0xff]
    %679 = vset.pattern.permute.xlu0 0
    %680 = vperm.xlu0 %679, %v670
    %v681 = vpop.permute.xlu0 %680
    %684 = vset.pattern.permute.xlu0 0
    %685 = vperm.xlu0 %684, %v671
    %v686 = vpop.permute.xlu0 %685
    %689 = vset.pattern.permute.xlu0 0
    %690 = vperm.xlu0 %689, %v672
    %v691 = vpop.permute.xlu0 %690
    %694 = vset.pattern.permute.xlu0 0
    %695 = vperm.xlu0 %694, %v673
    %v696 = vpop.permute.xlu0 %695
    %699 = vset.pattern.permute.xlu0 0
    %700 = vperm.xlu0 %699, %v674
    %v701 = vpop.permute.xlu0 %700
    %704 = vset.pattern.permute.xlu0 0
    %705 = vperm.xlu0 %704, %v675
    %v706 = vpop.permute.xlu0 %705
    %709 = vset.pattern.permute.xlu0 0
    %710 = vperm.xlu0 %709, %v676
    %v711 = vpop.permute.xlu0 %710
    %714 = vset.pattern.permute.xlu0 0
    %715 = vperm.xlu0 %714, %v677
    %v716 = vpop.permute.xlu0 %715
    %v718 = vadd.f32 %v640, %v681
    %v719 = vadd.f32 %v643, %v686
    %v720 = vadd.f32 %v648, %v691
    %v721 = vadd.f32 %v651, %v696
    %v722 = vadd.f32 %v656, %v701
    %v723 = vadd.f32 %v659, %v706
    %v724 = vadd.f32 %v664, %v711
    %v725 = vadd.f32 %v667, %v716
    %v726 = vmax.f32 %v718, 0.0
    %v727 = vmax.f32 %v719, 0.0
    %v728 = vmax.f32 %v720, 0.0
    %v729 = vmax.f32 %v721, 0.0
    %v730 = vmax.f32 %v722, 0.0
    %v731 = vmax.f32 %v723, 0.0
    %v732 = vmax.f32 %v724, 0.0
    %v733 = vmax.f32 %v725, 0.0
    %v734 = vld [vmem:[%s7] sm:$0xf]
    %v735 = vld [vmem:[%s7 + $0x4] sm:$0xf]
    %v736 = vld [vmem:[%s7 + $0x8] sm:$0xf]
    %v737 = vld [vmem:[%s7 + $0xc] sm:$0xf]
    %v738 = vpack.c.bf16 %v727, %v726
    %v739 = vpack.c.bf16 %v729, %v728
    %v740 = vpack.c.bf16 %v731, %v730
    %v741 = vpack.c.bf16 %v733, %v732
    %v742 = vld [vmem:[%s8] sm:$0xff]
    %v743 = vld [vmem:[%s8 + $0x8] sm:$0xff]
    %v744 = vld [vmem:[%s8 + $0x10] sm:$0xff]
    %v745 = vld [vmem:[%s8 + $0x18] sm:$0xff]
    %747 = vset.pattern.permute.xlu0 0
    %748 = vperm.xlu0 %747, %v742
    %v749 = vpop.permute.xlu0 %748
    %752 = vset.pattern.permute.xlu0 0
    %753 = vperm.xlu0 %752, %v743
    %v754 = vpop.permute.xlu0 %753
    %757 = vset.pattern.permute.xlu0 0
    %758 = vperm.xlu0 %757, %v744
    %v759 = vpop.permute.xlu0 %758
    %762 = vset.pattern.permute.xlu0 0
    %763 = vperm.xlu0 %762, %v745
    %v764 = vpop.permute.xlu0 %763
    %v770 = vunpack.c.l.b16 %v734
    %v771 = vunpack.c.l.b16 %v735
    %v772 = vunpack.c.l.b16 %v736
    %v773 = vunpack.c.l.b16 %v737
    %v774 = vpack.c.b16 %v771, %v770
    %v775 = vpack.c.b16 %v773, %v772
    %vm776 = vcmask 523264
    %v778 = vsel %vm776, %v774, 0
    %v781 = vsel %vm776, %v775, 0
    %783 = vmatprep.subr.bf16.mxu0 0
    %784 = vmatpush1.bf16.msra.mxu0 %v738
    %785 = vmatprep.subr.bf16.mxu0 0
    %786 = vmatpush1.bf16.msra.mxu0 %v739
    %787 = vmatprep.subr.bf16.mxu0 0
    %788 = vmatpush1.bf16.msra.mxu0 %v740
    %789 = vmatprep.subr.bf16.mxu0 0
    %790 = vmatpush1.bf16.msra.mxu0 %v741
    %791 = vmatprep.subr.bf16.mxu0 0
    %792 = vmatpush1.bf16.msra.mxu0 0
    %793 = vmatprep.subr.bf16.mxu0 0
    %794 = vmatpush1.bf16.msra.mxu0 0
    %795 = vmatprep.subr.bf16.mxu0 0
    %796 = vmatpush1.bf16.msra.mxu0 0
    %797 = vmatprep.subr.bf16.mxu0 0
    %798 = vmatpush1.bf16.msra.mxu0 0
    %799 = vmatprep.subr.bf16.mxu0 0
    %800 = vmatpush1.bf16.msra.mxu0 0
    %801 = vmatprep.subr.bf16.mxu0 0
    %802 = vmatpush1.bf16.msra.mxu0 0
    %803 = vmatprep.subr.bf16.mxu0 0
    %804 = vmatpush1.bf16.msra.mxu0 0
    %805 = vmatprep.subr.bf16.mxu0 0
    %806 = vmatpush1.bf16.msra.mxu0 0
    %807 = vmatprep.subr.bf16.mxu0 0
    %808 = vmatpush1.bf16.msra.mxu0 0
    %809 = vmatprep.subr.bf16.mxu0 0
    %810 = vmatpush1.bf16.msra.mxu0 0
    %811 = vmatprep.subr.bf16.mxu0 0
    %812 = vmatpush1.bf16.msra.mxu0 0
    %813 = vmatprep.subr.bf16.mxu0 0
    %814 = vmatpush1.bf16.msra.mxu0 0
    %815 = vmatprep.mubr.bf16.mxu0 0
    %816 = vmatmul.mubr.bf16.gmra.mrb[0].mxu0 %v778
    %v817 = vpop.f32.mrb[0].mxu0
    %v818 = vadd.f32 %v749, %v817
    %v819 = vpop.f32.mrb[0].mxu0
    %v820 = vpop.f32.mrb[0].mxu0
    %v821 = vadd.f32 %v754, %v820
    %v822 = vpop.f32.mrb[0].mxu0
    %823 = vmatprep.mubr.bf16.mxu0 0
    %824 = vmatmul.mubr.bf16.gmra.mrb[0].mxu0 %v781
    %v825 = vpop.f32.mrb[0].mxu0
    %v826 = vadd.f32 %v759, %v825
    %v827 = vpop.f32.mrb[0].mxu0
    %v828 = vpop.f32.mrb[0].mxu0
    %v829 = vadd.f32 %v764, %v828
    %v830 = vpop.f32.mrb[0].mxu0
    %831 = vdwg.mxu0
    %v832 = vmax.f32 %v818, 0.0
    %v833 = vmax.f32 %v821, 0.0
    %v834 = vmax.f32 %v826, 0.0
    %v835 = vmax.f32 %v829, 0.0
    %v836 = vld [vmem:[%s9] sm:$0x1]
    %v837 = vld [vmem:[%s10] sm:$0x1]
    %v839 = vsel %vm495, %v837, 0
    %841 = vmatprep.subr.mxu0 0.0
    %842 = vmatpush1.msra.mxu0 %v832
    %843 = vmatprep.subr.mxu0 0.0
    %844 = vmatpush1.msra.mxu0 %v833
    %845 = vmatprep.subr.mxu0 0.0
    %846 = vmatpush1.msra.mxu0 %v834
    %847 = vmatprep.subr.mxu0 0.0
    %848 = vmatpush1.msra.mxu0 %v835
    %849 = vmatprep.subr.mxu0 0.0
    %850 = vmatpush1.msra.mxu0 0.0
    %851 = vmatprep.subr.mxu0 0.0
    %852 = vmatpush1.msra.mxu0 0.0
    %853 = vmatprep.subr.mxu0 0.0
    %854 = vmatpush1.msra.mxu0 0.0
    %855 = vmatprep.subr.mxu0 0.0
    %856 = vmatpush1.msra.mxu0 0.0
    %857 = vmatprep.subr.mxu0 0.0
    %858 = vmatpush1.msra.mxu0 0.0
    %859 = vmatprep.subr.mxu0 0.0
    %860 = vmatpush1.msra.mxu0 0.0
    %861 = vmatprep.subr.mxu0 0.0
    %862 = vmatpush1.msra.mxu0 0.0
    %863 = vmatprep.subr.mxu0 0.0
    %864 = vmatpush1.msra.mxu0 0.0
    %865 = vmatprep.subr.mxu0 0.0
    %866 = vmatpush1.msra.mxu0 0.0
    %867 = vmatprep.subr.mxu0 0.0
    %868 = vmatpush1.msra.mxu0 0.0
    %869 = vmatprep.subr.mxu0 0.0
    %870 = vmatpush1.msra.mxu0 0.0
    %871 = vmatprep.subr.mxu0 0.0
    %872 = vmatpush1.msra.mxu0 0.0
    %873 = vmatprep.subr.mxu0 0.0
    %874 = vmatpush1.msra.mxu0 0.0
    %875 = vmatprep.subr.mxu0 0.0
    %876 = vmatpush1.msra.mxu0 0.0
    %877 = vmatprep.subr.mxu0 0.0
    %878 = vmatpush1.msra.mxu0 0.0
    %879 = vmatprep.subr.mxu0 0.0
    %880 = vmatpush1.msra.mxu0 0.0
    %881 = vmatprep.subr.mxu0 0.0
    %882 = vmatpush1.msra.mxu0 0.0
    %883 = vmatprep.subr.mxu0 0.0
    %884 = vmatpush1.msra.mxu0 0.0
    %885 = vmatprep.subr.mxu0 0.0
    %886 = vmatpush1.msra.mxu0 0.0
    %887 = vmatprep.subr.mxu0 0.0
    %888 = vmatpush1.msra.mxu0 0.0
    %889 = vmatprep.subr.mxu0 0.0
    %890 = vmatpush1.msra.mxu0 0.0
    %891 = vmatprep.subr.mxu0 0.0
    %892 = vmatpush1.msra.mxu0 0.0
    %893 = vmatprep.subr.mxu0 0.0
    %894 = vmatpush1.msra.mxu0 0.0
    %895 = vmatprep.subr.mxu0 0.0
    %896 = vmatpush1.msra.mxu0 0.0
    %897 = vmatprep.subr.mxu0 0.0
    %898 = vmatpush1.msra.mxu0 0.0
    %899 = vmatprep.subr.mxu0 0.0
    %900 = vmatpush1.msra.mxu0 0.0
    %901 = vmatprep.subr.mxu0 0.0
    %902 = vmatpush1.msra.mxu0 0.0
    %903 = vmatprep.subr.mxu0 0.0
    %904 = vmatpush1.msra.mxu0 0.0
    %905 = vmatprep.mubr.f32.mxu0 0.0
    %906 = vmatmul.mubr.f32.gmra.mrb[0].mxu0 %v839
    %v907 = vpop.f32.mrb[0].mxu0
    %v908 = vadd.f32 0.0, %v907
    %v909 = vpop.f32.mrb[0].mxu0
    %910 = vdwg.mxu0
    %v912 = vsel %vm495, %v836, 0
    %914 = vmatprep.subr.mxu0 0.0
    %915 = vmatpush1.msra.mxu0 %v451
    %916 = vmatprep.subr.mxu0 0.0
    %917 = vmatpush1.msra.mxu0 %v452
    %918 = vmatprep.subr.mxu0 0.0
    %919 = vmatpush1.msra.mxu0 %v453
    %920 = vmatprep.subr.mxu0 0.0
    %921 = vmatpush1.msra.mxu0 %v454
    %922 = vmatprep.subr.mxu0 0.0
    %923 = vmatpush1.msra.mxu0 0.0
    %924 = vmatprep.subr.mxu0 0.0
    %925 = vmatpush1.msra.mxu0 0.0
    %926 = vmatprep.subr.mxu0 0.0
    %927 = vmatpush1.msra.mxu0 0.0
    %928 = vmatprep.subr.mxu0 0.0
    %929 = vmatpush1.msra.mxu0 0.0
    %930 = vmatprep.subr.mxu0 0.0
    %931 = vmatpush1.msra.mxu0 0.0
    %932 = vmatprep.subr.mxu0 0.0
    %933 = vmatpush1.msra.mxu0 0.0
    %934 = vmatprep.subr.mxu0 0.0
    %935 = vmatpush1.msra.mxu0 0.0
    %936 = vmatprep.subr.mxu0 0.0
    %937 = vmatpush1.msra.mxu0 0.0
    %938 = vmatprep.subr.mxu0 0.0
    %939 = vmatpush1.msra.mxu0 0.0
    %940 = vmatprep.subr.mxu0 0.0
    %941 = vmatpush1.msra.mxu0 0.0
    %942 = vmatprep.subr.mxu0 0.0
    %943 = vmatpush1.msra.mxu0 0.0
    %944 = vmatprep.subr.mxu0 0.0
    %945 = vmatpush1.msra.mxu0 0.0
    %946 = vmatprep.subr.mxu0 0.0
    %947 = vmatpush1.msra.mxu0 0.0
    %948 = vmatprep.subr.mxu0 0.0
    %949 = vmatpush1.msra.mxu0 0.0
    %950 = vmatprep.subr.mxu0 0.0
    %951 = vmatpush1.msra.mxu0 0.0
    %952 = vmatprep.subr.mxu0 0.0
    %953 = vmatpush1.msra.mxu0 0.0
    %954 = vmatprep.subr.mxu0 0.0
    %955 = vmatpush1.msra.mxu0 0.0
    %956 = vmatprep.subr.mxu0 0.0
    %957 = vmatpush1.msra.mxu0 0.0
    %958 = vmatprep.subr.mxu0 0.0
    %959 = vmatpush1.msra.mxu0 0.0
    %960 = vmatprep.subr.mxu0 0.0
    %961 = vmatpush1.msra.mxu0 0.0
    %962 = vmatprep.subr.mxu0 0.0
    %963 = vmatpush1.msra.mxu0 0.0
    %964 = vmatprep.subr.mxu0 0.0
    %965 = vmatpush1.msra.mxu0 0.0
    %966 = vmatprep.subr.mxu0 0.0
    %967 = vmatpush1.msra.mxu0 0.0
    %968 = vmatprep.subr.mxu0 0.0
    %969 = vmatpush1.msra.mxu0 0.0
    %970 = vmatprep.subr.mxu0 0.0
    %971 = vmatpush1.msra.mxu0 0.0
    %972 = vmatprep.subr.mxu0 0.0
    %973 = vmatpush1.msra.mxu0 0.0
    %974 = vmatprep.subr.mxu0 0.0
    %975 = vmatpush1.msra.mxu0 0.0
    %976 = vmatprep.subr.mxu0 0.0
    %977 = vmatpush1.msra.mxu0 0.0
    %978 = vmatprep.mubr.f32.mxu0 0.0
    %979 = vmatmul.mubr.f32.gmra.mrb[0].mxu0 %v912
    %v980 = vpop.f32.mrb[0].mxu0
    %v981 = vadd.f32 %v908, %v980
    %v982 = vpop.f32.mrb[0].mxu0
    %983 = vdwg.mxu0
    %v984 = vld [vmem:[#allocation2] sm:$0x1]
    %986 = vset.pattern.permute.xlu0 0
    %987 = vperm.xlu0 %986, %v984
    %v988 = vpop.permute.xlu0 %987
    %v990 = vlaneseq
    %v991 = vshrl.u32 %v990, 7
    %v992 = vsub.s32 0, %v991
    %v993 = vrot.slane %v988, %v992
    %v994 = vadd.f32 %v981, %v993
    %v995 = vxor.u32 %v994, 2147483648
    %v996 = vmul.f32 %v995, 1.442695
    %v997 = vpow.pop %v996
    %v998 = vadd.f32 %v997, 1.0
    %v999 = vrcp.pop %v998
    %v1000 = vmul.f32 1.0, %v999
    %vm1001 = vcmask 57344
    %1002 = vst.msk [vmem:[#allocation3] sm:$0x1] %vm1001, %v1000
    // Predicated region
    $region50: #{tpu_custom_call.1} parent=1 // pred_check
      _
    $region51: #{tpu_custom_call.1} parent=1 // pred_check_branch
      %1004 = sbr.rel (0) target = $region53
    $region52: #{tpu_custom_call.1} parent=1 // pred_region
      %s1006 = ssub.s32 16, 16
      %1007 = vsyncadd [#allocation4], %s1006
      %s1009 = sshll.u32 [#allocation3], 4
      %s1010 = int_to_ptr.vmem [resolvable:$true] %s1009
      %1012 = dma.vmem_to_hbm [thread:$0]  %s1010, 16, %s12, [#allocation4]
    $region53: #{tpu_custom_call.1} parent=1 // pred_fallthru
      _
    // Predicated region
    $region54: #{tpu_custom_call.1} parent=1 // pred_check
      _
    $region55: #{tpu_custom_call.1} parent=1 // pred_check_branch
      %1014 = sbr.rel (0) target = $region57
    $region56: #{tpu_custom_call.1} parent=1 // pred_region
      %1015 = dma.done [#allocation4], 16
    $region57: #{tpu_custom_call.1} parent=1 // pred_fallthru
      _
    %1016 = vsyncpa [#allocation4], 1

</llo_original>
